<compile_context>
chip_gen: v6e
topology: v6e:2x2x1
jax: 0.10.0
libtpu: 0.0.40
codegen_flags: <defaults>
</compile_context>

<pallas_src>
import math
from functools import partial

import jax
import jax.numpy as jnp
from jax.experimental import pallas as pl
from jax.experimental.pallas import tpu as pltpu


def _ajtwgcn_kernel(emb_ref, adj_ref,
                    wg_ref, bg_ref,
                    wqkv_ref, bqkv_ref,
                    wo_ref, bo_ref,
                    w1_ref, w2_ref, b12_ref,
                    out_ref, ctx_ref,
                    *, num_heads: int):
    B, S, H = emb_ref.shape
    BS = B * S
    dk = H // num_heads

    emb = emb_ref[...]          # (B, S, H)
    adj = adj_ref[...]          # (B, S, S)

    # ---- SharedLayer (WGCN core): h = relu((A @ X) @ Wg + bg), batched ----
    agg = jnp.einsum('bij,bjh->bih', adj, emb,
                     preferred_element_type=jnp.float32)          # (B, S, H)
    x = agg.reshape(BS, H)                                        # fold B into rows
    h = jnp.maximum(
        jnp.dot(x, wg_ref[...], preferred_element_type=jnp.float32)
        + bg_ref[...], 0.0)                                       # (BS, H)

    # ---- level1 = fc1(shared_features) (bias added in packed store below) ----
    lvl1 = jnp.dot(h, w1_ref[...], preferred_element_type=jnp.float32)   # (BS, L)

    # ---- fused Q/K/V projection; Wq/bq already pre-scaled by 1/sqrt(dk) ----
    qkv = (jnp.dot(h, wqkv_ref[...], preferred_element_type=jnp.float32)
           + bqkv_ref[...])                                       # (BS, 3H)
    q = qkv[:, 0 * H:1 * H].reshape(B, S, H)
    k = qkv[:, 1 * H:2 * H].reshape(B, S, H)
    v = qkv[:, 2 * H:3 * H].reshape(B, S, H)

    # ---- multi-head self attention: heads unrolled (static), whole batch per
    #      head via a 3D einsum; per-head context written straight into a VMEM
    #      scratch lane slice (no concatenate). ----
    for head in range(num_heads):
        lo = head * dk
        qh = q[:, :, lo:lo + dk]                                  # (B, S, dk)
        kh = k[:, :, lo:lo + dk]
        vh = v[:, :, lo:lo + dk]
        s = jnp.einsum('bqd,bkd->bqk', qh, kh,
                       preferred_element_type=jnp.float32)        # (B, S, S)
        s = s - jnp.max(s, axis=-1, keepdims=True)
        p = jnp.exp(s)
        p = p * pl.reciprocal(jnp.sum(p, axis=-1, keepdims=True), approx=True)
        ctx_h = jnp.einsum('bqk,bkd->bqd', p, vh,
                           preferred_element_type=jnp.float32)    # (B, S, dk)
        ctx_ref[:, lo:lo + dk] = ctx_h.reshape(BS, dk)

    attn = (jnp.dot(ctx_ref[...], wo_ref[...],
                    preferred_element_type=jnp.float32) + bo_ref[...])    # (BS, H)

    # ---- level2 = fc2(attended features) ----
    lvl2 = jnp.dot(attn, w2_ref[...], preferred_element_type=jnp.float32)  # (BS, L)

    # ---- packed lane-dense output: [level1 | level2] + [b1 | b2] ----
    out_ref[...] = jnp.concatenate([lvl1, lvl2], axis=-1) + b12_ref[...]


def ajtwgcn_forward(emb, adj, params, *, num_heads):
    """emb: (B, S, H) float32, adj: (B, S, S) float32 -> (level1, level2)."""
    B, S, H = emb.shape
    L = params["w1"].shape[1]
    dk = H // num_heads
    inv_sqrt_dk = 1.0 / math.sqrt(dk)

    # Host-side fusion: QKV weights into one (H, 3H) matmul; fold the
    # 1/sqrt(dk) attention scale into Wq/bq; pack fc1/fc2 biases.
    wqkv = jnp.concatenate(
        [params["wq"] * inv_sqrt_dk, params["wk"], params["wv"]], axis=1)  # (H, 3H)
    bqkv = jnp.concatenate(
        [params["bq"] * inv_sqrt_dk, params["bk"], params["bv"]], axis=1)  # (1, 3H)
    b12 = jnp.concatenate([params["b1"], params["b2"]], axis=1)            # (1, 2L)

    kernel = partial(_ajtwgcn_kernel, num_heads=num_heads)
    out = pl.pallas_call(
        kernel,
        out_shape=jax.ShapeDtypeStruct((B * S, 2 * L), jnp.float32),
        scratch_shapes=[pltpu.VMEM((B * S, H), jnp.float32)],   # attention context
    )(emb, adj,
      params["wg"], params["bg"],
      wqkv, bqkv,
      params["wo"], params["bo"],
      params["w1"], params["w2"], b12)

    level1 = out[:, :L].reshape(B, S, L)
    level2 = out[:, L:].reshape(B, S, L)
    return level1, level2


def _init_params(key, hidden, num_labels):
    def lin(k, fan_in, fan_out):
        kw, kb = jax.random.split(k)
        scale = 1.0 / math.sqrt(fan_in)
        w = jax.random.uniform(kw, (fan_in, fan_out), jnp.float32, -scale, scale)
        b = jax.random.uniform(kb, (1, fan_out), jnp.float32, -scale, scale)
        return w, b

    ks = jax.random.split(key, 7)
    p = {}
    p["wg"], p["bg"] = lin(ks[0], hidden, hidden)          # WGCN weight
    p["w1"], p["b1"] = lin(ks[1], hidden, num_labels)      # fc1
    p["wq"], p["bq"] = lin(ks[2], hidden, hidden)
    p["wk"], p["bk"] = lin(ks[3], hidden, hidden)
    p["wv"], p["bv"] = lin(ks[4], hidden, hidden)
    p["wo"], p["bo"] = lin(ks[5], hidden, hidden)
    p["w2"], p["b2"] = lin(ks[6], hidden, num_labels)      # fc2
    return p


if __name__ == "__main__":
    B, S, H = 2, 8, 32          # batch, seq, wgcn_hidden_dim
    L = 4                       # num_labels
    NUM_HEADS = 4
    VOCAB, NDEP = 50, 10

    key = jax.random.PRNGKey(0)
    k_ids, k_heads, k_dep, k_wemb, k_demb, k_params = jax.random.split(key, 6)

    # Synthetic token-level inputs (shapes implied by forward signature).
    input_ids = jax.random.randint(k_ids, (B, S), 0, VOCAB)
    head_ids = jax.random.randint(k_heads, (B, S), 0, S)      # dependency heads
    segment_ids = jnp.zeros((B, S), jnp.int32)
    input_mask = jnp.ones((B, S), jnp.float32)
    dep_ids = jax.random.randint(k_dep, (B, S), 0, NDEP)

    # Glue (plain JAX): embedding lookups + adjacency construction.
    word_emb_table = jax.random.normal(k_wemb, (VOCAB, H), jnp.float32) * 0.02
    dep_emb_table = jax.random.normal(k_demb, (NDEP, H), jnp.float32) * 0.02
    emb = word_emb_table[input_ids] + dep_emb_table[dep_ids]
    emb = emb * input_mask[..., None]                                    # (B, S, H)

    adj = jax.nn.one_hot(head_ids, S, dtype=jnp.float32)                 # (B, S, S)
    adj = adj + jnp.eye(S, dtype=jnp.float32)[None]                      # self loops
    adj = adj * input_mask[:, :, None] * input_mask[:, None, :]
    adj = adj / jnp.maximum(adj.sum(-1, keepdims=True), 1.0)             # row-norm

    params = _init_params(k_params, H, L)

    level1, level2 = ajtwgcn_forward(emb, adj, params, num_heads=NUM_HEADS)
    jax.block_until_ready((level1, level2))

    assert level1.shape == (B, S, L) and level2.shape == (B, S, L)
    assert jnp.all(jnp.isfinite(level1)) and jnp.all(jnp.isfinite(level2))
    print("KERNEL_OK")
</pallas_src>

<mosaic_0001>
module attributes {stable_mosaic.version = 11 : i64} {
  func.func @_ajtwgcn_kernel(%arg0: memref<2x8x32xf32, #tpu.memory_space<vmem>>, %arg1: memref<2x8x8xf32, #tpu.memory_space<vmem>>, %arg2: memref<32x32xf32, #tpu.memory_space<vmem>>, %arg3: memref<1x32xf32, #tpu.memory_space<vmem>>, %arg4: memref<32x96xf32, #tpu.memory_space<vmem>>, %arg5: memref<1x96xf32, #tpu.memory_space<vmem>>, %arg6: memref<32x32xf32, #tpu.memory_space<vmem>>, %arg7: memref<1x32xf32, #tpu.memory_space<vmem>>, %arg8: memref<32x4xf32, #tpu.memory_space<vmem>>, %arg9: memref<32x4xf32, #tpu.memory_space<vmem>>, %arg10: memref<1x8xf32, #tpu.memory_space<vmem>>, %arg11: memref<16x8xf32, #tpu.memory_space<vmem>>, %arg12: memref<16x32xf32, #tpu.memory_space<vmem>>) attributes {dimension_semantics = [], scalar_prefetch = 0 : i64, scratch_operands = 1 : i64, tpu.core_type = #tpu.core_type<tc>} {
    %c0 = arith.constant 0 : index
    %c0_0 = arith.constant 0 : index
    %c0_1 = arith.constant 0 : index
    %0 = vector.load %arg0[%c0, %c0_0, %c0_1] : memref<2x8x32xf32, #tpu.memory_space<vmem>>, vector<2x8x32xf32>
    %c0_2 = arith.constant 0 : index
    %c0_3 = arith.constant 0 : index
    %c0_4 = arith.constant 0 : index
    %1 = vector.load %arg1[%c0_2, %c0_3, %c0_4] : memref<2x8x8xf32, #tpu.memory_space<vmem>>, vector<2x8x8xf32>
    "tpu.trace_start"() <{level = 10 : i32, message = "bij,bjh->bih"}> : () -> ()
    %cst = arith.constant dense<0.000000e+00> : vector<2x8x32xf32>
    %2 = tpu.matmul %1, %0, %cst {dimension_numbers = #tpu.dot_dimension_numbers<[2], [1], [1], [2], [0, 0, 0, 1, 1, 2], [0], [0]>} : vector<2x8x8xf32>, vector<2x8x32xf32>, vector<2x8x32xf32> -> vector<2x8x32xf32>
    "tpu.trace_stop"() : () -> ()
    %3 = vector.shape_cast %2 : vector<2x8x32xf32> to vector<16x32xf32>
    %c0_5 = arith.constant 0 : index
    %c0_6 = arith.constant 0 : index
    %4 = vector.load %arg2[%c0_5, %c0_6] : memref<32x32xf32, #tpu.memory_space<vmem>>, vector<32x32xf32>
    %cst_7 = arith.constant dense<0.000000e+00> : vector<16x32xf32>
    %5 = tpu.matmul %3, %4, %cst_7 {dimension_numbers = #tpu.dot_dimension_numbers<[1], [0], [0], [1], [0, 0, 1, 1], [], []>} : vector<16x32xf32>, vector<32x32xf32>, vector<16x32xf32> -> vector<16x32xf32>
    %c0_8 = arith.constant 0 : index
    %c0_9 = arith.constant 0 : index
    %6 = vector.load %arg3[%c0_8, %c0_9] : memref<1x32xf32, #tpu.memory_space<vmem>>, vector<1x32xf32>
    %7 = vector.broadcast %6 : vector<1x32xf32> to vector<16x32xf32>
    %8 = arith.addf %5, %7 : vector<16x32xf32>
    %cst_10 = arith.constant 0.000000e+00 : f32
    %9 = vector.broadcast %cst_10 : f32 to vector<16x32xf32>
    %10 = arith.maximumf %8, %9 : vector<16x32xf32>
    %c0_11 = arith.constant 0 : index
    %c0_12 = arith.constant 0 : index
    %11 = vector.load %arg8[%c0_11, %c0_12] : memref<32x4xf32, #tpu.memory_space<vmem>>, vector<32x4xf32>
    %cst_13 = arith.constant dense<0.000000e+00> : vector<16x4xf32>
    %12 = tpu.matmul %10, %11, %cst_13 {dimension_numbers = #tpu.dot_dimension_numbers<[1], [0], [0], [1], [0, 0, 1, 1], [], []>} : vector<16x32xf32>, vector<32x4xf32>, vector<16x4xf32> -> vector<16x4xf32>
    %c0_14 = arith.constant 0 : index
    %c0_15 = arith.constant 0 : index
    %13 = vector.load %arg4[%c0_14, %c0_15] : memref<32x96xf32, #tpu.memory_space<vmem>>, vector<32x96xf32>
    %cst_16 = arith.constant dense<0.000000e+00> : vector<16x96xf32>
    %14 = tpu.matmul %10, %13, %cst_16 {dimension_numbers = #tpu.dot_dimension_numbers<[1], [0], [0], [1], [0, 0, 1, 1], [], []>} : vector<16x32xf32>, vector<32x96xf32>, vector<16x96xf32> -> vector<16x96xf32>
    %c0_17 = arith.constant 0 : index
    %c0_18 = arith.constant 0 : index
    %15 = vector.load %arg5[%c0_17, %c0_18] : memref<1x96xf32, #tpu.memory_space<vmem>>, vector<1x96xf32>
    %16 = vector.broadcast %15 : vector<1x96xf32> to vector<16x96xf32>
    %17 = arith.addf %14, %16 : vector<16x96xf32>
    %18 = vector.extract_strided_slice %17 {offsets = [0, 0], sizes = [16, 32], strides = [1, 1]} : vector<16x96xf32> to vector<16x32xf32>
    %19 = vector.shape_cast %18 : vector<16x32xf32> to vector<2x8x32xf32>
    %20 = vector.extract_strided_slice %17 {offsets = [0, 32], sizes = [16, 32], strides = [1, 1]} : vector<16x96xf32> to vector<16x32xf32>
    %21 = vector.shape_cast %20 : vector<16x32xf32> to vector<2x8x32xf32>
    %22 = vector.extract_strided_slice %17 {offsets = [0, 64], sizes = [16, 32], strides = [1, 1]} : vector<16x96xf32> to vector<16x32xf32>
    %23 = vector.shape_cast %22 : vector<16x32xf32> to vector<2x8x32xf32>
    %24 = vector.extract_strided_slice %19 {offsets = [0, 0, 0], sizes = [2, 8, 8], strides = [1, 1, 1]} : vector<2x8x32xf32> to vector<2x8x8xf32>
    %25 = vector.extract_strided_slice %21 {offsets = [0, 0, 0], sizes = [2, 8, 8], strides = [1, 1, 1]} : vector<2x8x32xf32> to vector<2x8x8xf32>
    %26 = vector.extract_strided_slice %23 {offsets = [0, 0, 0], sizes = [2, 8, 8], strides = [1, 1, 1]} : vector<2x8x32xf32> to vector<2x8x8xf32>
    "tpu.trace_start"() <{level = 10 : i32, message = "bqd,bkd->bqk"}> : () -> ()
    %cst_19 = arith.constant dense<0.000000e+00> : vector<2x8x8xf32>
    %27 = tpu.matmul %24, %25, %cst_19 {dimension_numbers = #tpu.dot_dimension_numbers<[2], [2], [1], [1], [0, 0, 0, 1, 1, 1], [0], [0]>} : vector<2x8x8xf32>, vector<2x8x8xf32>, vector<2x8x8xf32> -> vector<2x8x8xf32>
    "tpu.trace_stop"() : () -> ()
    %cst_20 = arith.constant dense<0xFF800000> : vector<2x8xf32>
    %28 = vector.multi_reduction <maximumf>, %27, %cst_20 [2] : vector<2x8x8xf32> to vector<2x8xf32>
    %29 = vector.shape_cast %28 : vector<2x8xf32> to vector<2x8x1xf32>
    %30 = vector.broadcast %29 : vector<2x8x1xf32> to vector<2x8x8xf32>
    %31 = arith.subf %27, %30 : vector<2x8x8xf32>
    %32 = math.exp %31 : vector<2x8x8xf32>
    %cst_21 = arith.constant dense<0.000000e+00> : vector<2x8xf32>
    %33 = vector.multi_reduction <add>, %32, %cst_21 [2] : vector<2x8x8xf32> to vector<2x8xf32>
    %34 = vector.shape_cast %33 : vector<2x8xf32> to vector<2x8x1xf32>
    %35 = tpu.reciprocal %34 {approx = true} : vector<2x8x1xf32> -> vector<2x8x1xf32>
    %36 = vector.broadcast %35 : vector<2x8x1xf32> to vector<2x8x8xf32>
    %37 = arith.mulf %32, %36 : vector<2x8x8xf32>
    "tpu.trace_start"() <{level = 10 : i32, message = "bqk,bkd->bqd"}> : () -> ()
    %cst_22 = arith.constant dense<0.000000e+00> : vector<2x8x8xf32>
    %38 = tpu.matmul %37, %26, %cst_22 {dimension_numbers = #tpu.dot_dimension_numbers<[2], [1], [1], [2], [0, 0, 0, 1, 1, 2], [0], [0]>} : vector<2x8x8xf32>, vector<2x8x8xf32>, vector<2x8x8xf32> -> vector<2x8x8xf32>
    "tpu.trace_stop"() : () -> ()
    %39 = vector.shape_cast %38 : vector<2x8x8xf32> to vector<16x8xf32>
    %c0_23 = arith.constant 0 : index
    %c0_24 = arith.constant 0 : index
    %40 = vector.load %arg12[%c0_23, %c0_24] : memref<16x32xf32, #tpu.memory_space<vmem>>, vector<16x8xf32>
    tpu.vector_store %arg12[%c0_23, %c0_24], %39 {strides = array<i32>} : memref<16x32xf32, #tpu.memory_space<vmem>>, vector<16x8xf32>,
    %41 = vector.extract_strided_slice %19 {offsets = [0, 0, 8], sizes = [2, 8, 8], strides = [1, 1, 1]} : vector<2x8x32xf32> to vector<2x8x8xf32>
    %42 = vector.extract_strided_slice %21 {offsets = [0, 0, 8], sizes = [2, 8, 8], strides = [1, 1, 1]} : vector<2x8x32xf32> to vector<2x8x8xf32>
    %43 = vector.extract_strided_slice %23 {offsets = [0, 0, 8], sizes = [2, 8, 8], strides = [1, 1, 1]} : vector<2x8x32xf32> to vector<2x8x8xf32>
    "tpu.trace_start"() <{level = 10 : i32, message = "bqd,bkd->bqk"}> : () -> ()
    %cst_25 = arith.constant dense<0.000000e+00> : vector<2x8x8xf32>
    %44 = tpu.matmul %41, %42, %cst_25 {dimension_numbers = #tpu.dot_dimension_numbers<[2], [2], [1], [1], [0, 0, 0, 1, 1, 1], [0], [0]>} : vector<2x8x8xf32>, vector<2x8x8xf32>, vector<2x8x8xf32> -> vector<2x8x8xf32>
    "tpu.trace_stop"() : () -> ()
    %cst_26 = arith.constant dense<0xFF800000> : vector<2x8xf32>
    %45 = vector.multi_reduction <maximumf>, %44, %cst_26 [2] : vector<2x8x8xf32> to vector<2x8xf32>
    %46 = vector.shape_cast %45 : vector<2x8xf32> to vector<2x8x1xf32>
    %47 = vector.broadcast %46 : vector<2x8x1xf32> to vector<2x8x8xf32>
    %48 = arith.subf %44, %47 : vector<2x8x8xf32>
    %49 = math.exp %48 : vector<2x8x8xf32>
    %cst_27 = arith.constant dense<0.000000e+00> : vector<2x8xf32>
    %50 = vector.multi_reduction <add>, %49, %cst_27 [2] : vector<2x8x8xf32> to vector<2x8xf32>
    %51 = vector.shape_cast %50 : vector<2x8xf32> to vector<2x8x1xf32>
    %52 = tpu.reciprocal %51 {approx = true} : vector<2x8x1xf32> -> vector<2x8x1xf32>
    %53 = vector.broadcast %52 : vector<2x8x1xf32> to vector<2x8x8xf32>
    %54 = arith.mulf %49, %53 : vector<2x8x8xf32>
    "tpu.trace_start"() <{level = 10 : i32, message = "bqk,bkd->bqd"}> : () -> ()
    %cst_28 = arith.constant dense<0.000000e+00> : vector<2x8x8xf32>
    %55 = tpu.matmul %54, %43, %cst_28 {dimension_numbers = #tpu.dot_dimension_numbers<[2], [1], [1], [2], [0, 0, 0, 1, 1, 2], [0], [0]>} : vector<2x8x8xf32>, vector<2x8x8xf32>, vector<2x8x8xf32> -> vector<2x8x8xf32>
    "tpu.trace_stop"() : () -> ()
    %56 = vector.shape_cast %55 : vector<2x8x8xf32> to vector<16x8xf32>
    %c0_29 = arith.constant 0 : index
    %c8 = arith.constant 8 : index
    %57 = vector.load %arg12[%c0_29, %c8] : memref<16x32xf32, #tpu.memory_space<vmem>>, vector<16x8xf32>
    tpu.vector_store %arg12[%c0_29, %c8], %56 {strides = array<i32>} : memref<16x32xf32, #tpu.memory_space<vmem>>, vector<16x8xf32>,
    %58 = vector.extract_strided_slice %19 {offsets = [0, 0, 16], sizes = [2, 8, 8], strides = [1, 1, 1]} : vector<2x8x32xf32> to vector<2x8x8xf32>
    %59 = vector.extract_strided_slice %21 {offsets = [0, 0, 16], sizes = [2, 8, 8], strides = [1, 1, 1]} : vector<2x8x32xf32> to vector<2x8x8xf32>
    %60 = vector.extract_strided_slice %23 {offsets = [0, 0, 16], sizes = [2, 8, 8], strides = [1, 1, 1]} : vector<2x8x32xf32> to vector<2x8x8xf32>
    "tpu.trace_start"() <{level = 10 : i32, message = "bqd,bkd->bqk"}> : () -> ()
    %cst_30 = arith.constant dense<0.000000e+00> : vector<2x8x8xf32>
    %61 = tpu.matmul %58, %59, %cst_30 {dimension_numbers = #tpu.dot_dimension_numbers<[2], [2], [1], [1], [0, 0, 0, 1, 1, 1], [0], [0]>} : vector<2x8x8xf32>, vector<2x8x8xf32>, vector<2x8x8xf32> -> vector<2x8x8xf32>
    "tpu.trace_stop"() : () -> ()
    %cst_31 = arith.constant dense<0xFF800000> : vector<2x8xf32>
    %62 = vector.multi_reduction <maximumf>, %61, %cst_31 [2] : vector<2x8x8xf32> to vector<2x8xf32>
    %63 = vector.shape_cast %62 : vector<2x8xf32> to vector<2x8x1xf32>
    %64 = vector.broadcast %63 : vector<2x8x1xf32> to vector<2x8x8xf32>
    %65 = arith.subf %61, %64 : vector<2x8x8xf32>
    %66 = math.exp %65 : vector<2x8x8xf32>
    %cst_32 = arith.constant dense<0.000000e+00> : vector<2x8xf32>
    %67 = vector.multi_reduction <add>, %66, %cst_32 [2] : vector<2x8x8xf32> to vector<2x8xf32>
    %68 = vector.shape_cast %67 : vector<2x8xf32> to vector<2x8x1xf32>
    %69 = tpu.reciprocal %68 {approx = true} : vector<2x8x1xf32> -> vector<2x8x1xf32>
    %70 = vector.broadcast %69 : vector<2x8x1xf32> to vector<2x8x8xf32>
    %71 = arith.mulf %66, %70 : vector<2x8x8xf32>
    "tpu.trace_start"() <{level = 10 : i32, message = "bqk,bkd->bqd"}> : () -> ()
    %cst_33 = arith.constant dense<0.000000e+00> : vector<2x8x8xf32>
    %72 = tpu.matmul %71, %60, %cst_33 {dimension_numbers = #tpu.dot_dimension_numbers<[2], [1], [1], [2], [0, 0, 0, 1, 1, 2], [0], [0]>} : vector<2x8x8xf32>, vector<2x8x8xf32>, vector<2x8x8xf32> -> vector<2x8x8xf32>
    "tpu.trace_stop"() : () -> ()
    %73 = vector.shape_cast %72 : vector<2x8x8xf32> to vector<16x8xf32>
    %c0_34 = arith.constant 0 : index
    %c16 = arith.constant 16 : index
    %74 = vector.load %arg12[%c0_34, %c16] : memref<16x32xf32, #tpu.memory_space<vmem>>, vector<16x8xf32>
    tpu.vector_store %arg12[%c0_34, %c16], %73 {strides = array<i32>} : memref<16x32xf32, #tpu.memory_space<vmem>>, vector<16x8xf32>,
    %75 = vector.extract_strided_slice %19 {offsets = [0, 0, 24], sizes = [2, 8, 8], strides = [1, 1, 1]} : vector<2x8x32xf32> to vector<2x8x8xf32>
    %76 = vector.extract_strided_slice %21 {offsets = [0, 0, 24], sizes = [2, 8, 8], strides = [1, 1, 1]} : vector<2x8x32xf32> to vector<2x8x8xf32>
    %77 = vector.extract_strided_slice %23 {offsets = [0, 0, 24], sizes = [2, 8, 8], strides = [1, 1, 1]} : vector<2x8x32xf32> to vector<2x8x8xf32>
    "tpu.trace_start"() <{level = 10 : i32, message = "bqd,bkd->bqk"}> : () -> ()
    %cst_35 = arith.constant dense<0.000000e+00> : vector<2x8x8xf32>
    %78 = tpu.matmul %75, %76, %cst_35 {dimension_numbers = #tpu.dot_dimension_numbers<[2], [2], [1], [1], [0, 0, 0, 1, 1, 1], [0], [0]>} : vector<2x8x8xf32>, vector<2x8x8xf32>, vector<2x8x8xf32> -> vector<2x8x8xf32>
    "tpu.trace_stop"() : () -> ()
    %cst_36 = arith.constant dense<0xFF800000> : vector<2x8xf32>
    %79 = vector.multi_reduction <maximumf>, %78, %cst_36 [2] : vector<2x8x8xf32> to vector<2x8xf32>
    %80 = vector.shape_cast %79 : vector<2x8xf32> to vector<2x8x1xf32>
    %81 = vector.broadcast %80 : vector<2x8x1xf32> to vector<2x8x8xf32>
    %82 = arith.subf %78, %81 : vector<2x8x8xf32>
    %83 = math.exp %82 : vector<2x8x8xf32>
    %cst_37 = arith.constant dense<0.000000e+00> : vector<2x8xf32>
    %84 = vector.multi_reduction <add>, %83, %cst_37 [2] : vector<2x8x8xf32> to vector<2x8xf32>
    %85 = vector.shape_cast %84 : vector<2x8xf32> to vector<2x8x1xf32>
    %86 = tpu.reciprocal %85 {approx = true} : vector<2x8x1xf32> -> vector<2x8x1xf32>
    %87 = vector.broadcast %86 : vector<2x8x1xf32> to vector<2x8x8xf32>
    %88 = arith.mulf %83, %87 : vector<2x8x8xf32>
    "tpu.trace_start"() <{level = 10 : i32, message = "bqk,bkd->bqd"}> : () -> ()
    %cst_38 = arith.constant dense<0.000000e+00> : vector<2x8x8xf32>
    %89 = tpu.matmul %88, %77, %cst_38 {dimension_numbers = #tpu.dot_dimension_numbers<[2], [1], [1], [2], [0, 0, 0, 1, 1, 2], [0], [0]>} : vector<2x8x8xf32>, vector<2x8x8xf32>, vector<2x8x8xf32> -> vector<2x8x8xf32>
    "tpu.trace_stop"() : () -> ()
    %90 = vector.shape_cast %89 : vector<2x8x8xf32> to vector<16x8xf32>
    %c0_39 = arith.constant 0 : index
    %c24 = arith.constant 24 : index
    %91 = vector.load %arg12[%c0_39, %c24] : memref<16x32xf32, #tpu.memory_space<vmem>>, vector<16x8xf32>
    tpu.vector_store %arg12[%c0_39, %c24], %90 {strides = array<i32>} : memref<16x32xf32, #tpu.memory_space<vmem>>, vector<16x8xf32>,
    %c0_40 = arith.constant 0 : index
    %c0_41 = arith.constant 0 : index
    %92 = vector.load %arg12[%c0_40, %c0_41] : memref<16x32xf32, #tpu.memory_space<vmem>>, vector<16x32xf32>
    %c0_42 = arith.constant 0 : index
    %c0_43 = arith.constant 0 : index
    %93 = vector.load %arg6[%c0_42, %c0_43] : memref<32x32xf32, #tpu.memory_space<vmem>>, vector<32x32xf32>
    %cst_44 = arith.constant dense<0.000000e+00> : vector<16x32xf32>
    %94 = tpu.matmul %92, %93, %cst_44 {dimension_numbers = #tpu.dot_dimension_numbers<[1], [0], [0], [1], [0, 0, 1, 1], [], []>} : vector<16x32xf32>, vector<32x32xf32>, vector<16x32xf32> -> vector<16x32xf32>
    %c0_45 = arith.constant 0 : index
    %c0_46 = arith.constant 0 : index
    %95 = vector.load %arg7[%c0_45, %c0_46] : memref<1x32xf32, #tpu.memory_space<vmem>>, vector<1x32xf32>
    %96 = vector.broadcast %95 : vector<1x32xf32> to vector<16x32xf32>
    %97 = arith.addf %94, %96 : vector<16x32xf32>
    %c0_47 = arith.constant 0 : index
    %c0_48 = arith.constant 0 : index
    %98 = vector.load %arg9[%c0_47, %c0_48] : memref<32x4xf32, #tpu.memory_space<vmem>>, vector<32x4xf32>
    %cst_49 = arith.constant dense<0.000000e+00> : vector<16x4xf32>
    %99 = tpu.matmul %97, %98, %cst_49 {dimension_numbers = #tpu.dot_dimension_numbers<[1], [0], [0], [1], [0, 0, 1, 1], [], []>} : vector<16x32xf32>, vector<32x4xf32>, vector<16x4xf32> -> vector<16x4xf32>
    %100 = tpu.concatenate %12, %99 in 1 : vector<16x4xf32>, vector<16x4xf32> -> vector<16x8xf32>
    %c0_50 = arith.constant 0 : index
    %c0_51 = arith.constant 0 : index
    %101 = vector.load %arg10[%c0_50, %c0_51] : memref<1x8xf32, #tpu.memory_space<vmem>>, vector<1x8xf32>
    %102 = vector.broadcast %101 : vector<1x8xf32> to vector<16x8xf32>
    %103 = arith.addf %100, %102 : vector<16x8xf32>
    %c0_52 = arith.constant 0 : index
    %c0_53 = arith.constant 0 : index
    %104 = vector.load %arg11[%c0_52, %c0_53] : memref<16x8xf32, #tpu.memory_space<vmem>>, vector<16x8xf32>
    tpu.vector_store %arg11[%c0_52, %c0_53], %103 {strides = array<i32>} : memref<16x8xf32, #tpu.memory_space<vmem>>, vector<16x8xf32>,
    return
  }
}

</mosaic_0001>

<llo_original>
// kernel: tpu_custom_call.1
$region0: #{tpu_custom_call.1}
  #allocation0 [shape = 'u32[]', space=smem, size = 0x4, offset = 0x4, fixed_abs, tag = 'smem constant byte address 0x4 - core index']
  #allocation1 [shape = 'u32[144,128]{1,0:T(1,128)}', space=vmem, size = 0x12000, scoped, tag = 'internal scratch']
  #allocation2 [shape = 'f32[16,32]{1,0:T(8,128)}', space=vmem, size = 0x2000, scoped, tag = 'scratch operand']
  %s0 = inlined_call_operand.hbm [shape: f32[2,8,32], index: 0, kind: input, shape index: {}]
  %s1 = inlined_call_operand.hbm [shape: f32[2,8,8], index: 1, kind: input, shape index: {}]
  %s2 = inlined_call_operand.vmem [shape: f32[32,32], index: 2, kind: input, shape index: {}]
  %s3 = inlined_call_operand.vmem [shape: f32[1,32], index: 3, kind: input, shape index: {}]
  %s4 = inlined_call_operand.vmem [shape: f32[32,96], index: 4, kind: input, shape index: {}]
  %s5 = inlined_call_operand.vmem [shape: f32[1,96], index: 5, kind: input, shape index: {}]
  %s6 = inlined_call_operand.hbm [shape: f32[32,32], index: 6, kind: input, shape index: {}]
  %s7 = inlined_call_operand.vmem [shape: f32[1,32], index: 7, kind: input, shape index: {}]
  %s8 = inlined_call_operand.vmem [shape: f32[32,4], index: 8, kind: input, shape index: {}]
  %s9 = inlined_call_operand.vmem [shape: f32[32,4], index: 9, kind: input, shape index: {}]
  %s10 = inlined_call_operand.vmem [shape: f32[1,8], index: 10, kind: input, shape index: {}]
  %s11 = inlined_call_operand.vmem [shape: f32[16,8], index: 11, kind: output, shape index: {}]
  %s12 = sld [smem:[#allocation0]]
  $region66: #{tpu_custom_call.1} parent=0
    _
  %s14 = ssub.s32 1, %s12
  %s15 = scalar_select 0, %s14, %s12
  $region1: #{tpu_custom_call.1} parent=0
    #allocation3 [shape = 'u8[8192]{0}', space=vmem, size = 0x2000, scoped, tag = 'input window, operand 0, single buffered']
    #allocation4 [shape = 's32[1]{0}', space=sflag, size = 0x4, scoped, tag = 'scoped memory for tpu_custom_call.1']
    #allocation5 [shape = 'u8[8192]{0}', space=vmem, size = 0x2000, scoped, tag = 'input window, operand 1, single buffered']
    #allocation6 [shape = 's32[1]{0}', space=sflag, size = 0x4, scoped, tag = 'scoped memory for tpu_custom_call.1']
    #allocation7 [shape = 'u8[16384]{0}', space=vmem, size = 0x4000, scoped, tag = 'input window, operand 6, single buffered']
    %16 = vsyncpa [#allocation4], 0
    %17 = vsyncpa [#allocation6], 0
    // Predicated region
    $region2: #{tpu_custom_call.1} parent=1 // pred_check
      _
    $region3: #{tpu_custom_call.1} parent=1 // pred_check_branch
      %19 = sbr.rel (0) target = $region5
    $region4: #{tpu_custom_call.1} parent=1 // pred_region
      %s21 = ssub.s32 256, 256
      %22 = vsyncadd [#allocation4], %s21
      %s23 = sshll.u32 [#allocation3], 4
      %s24 = int_to_ptr.vmem [resolvable:$true] %s23
      %29 = dma.hbm_to_vmem [thread:$0]  %s0, 256, %s24, [#allocation4], 128, 128, 8
    $region5: #{tpu_custom_call.1} parent=1 // pred_fallthru
      _
    // Predicated region
    $region6: #{tpu_custom_call.1} parent=1 // pred_check
      _
    $region7: #{tpu_custom_call.1} parent=1 // pred_check_branch
      %31 = sbr.rel (0) target = $region9
    $region8: #{tpu_custom_call.1} parent=1 // pred_region
      %s33 = ssub.s32 256, 256
      %34 = vsyncadd [#allocation6], %s33
      %s35 = sshll.u32 [#allocation5], 4
      %s36 = int_to_ptr.vmem [resolvable:$true] %s35
      %41 = dma.hbm_to_vmem [thread:$0]  %s1, 256, %s36, [#allocation6], 128, 128, 8
    $region9: #{tpu_custom_call.1} parent=1 // pred_fallthru
      _
    // Predicated region
    $region10: #{tpu_custom_call.1} parent=1 // pred_check
      _
    $region11: #{tpu_custom_call.1} parent=1 // pred_check_branch
      %43 = sbr.rel (0) target = $region13
    $region12: #{tpu_custom_call.1} parent=1 // pred_region
      _
    $region13: #{tpu_custom_call.1} parent=1 // pred_fallthru
      _
    // Predicated region
    $region14: #{tpu_custom_call.1} parent=1 // pred_check
      _
    $region15: #{tpu_custom_call.1} parent=1 // pred_check_branch
      %45 = sbr.rel (0) target = $region17
    $region16: #{tpu_custom_call.1} parent=1 // pred_region
      _
    $region17: #{tpu_custom_call.1} parent=1 // pred_fallthru
      _
    // Predicated region
    $region18: #{tpu_custom_call.1} parent=1 // pred_check
      _
    $region19: #{tpu_custom_call.1} parent=1 // pred_check_branch
      %47 = sbr.rel (0) target = $region21
    $region20: #{tpu_custom_call.1} parent=1 // pred_region
      _
    $region21: #{tpu_custom_call.1} parent=1 // pred_fallthru
      _
    // Predicated region
    $region22: #{tpu_custom_call.1} parent=1 // pred_check
      _
    $region23: #{tpu_custom_call.1} parent=1 // pred_check_branch
      %49 = sbr.rel (0) target = $region25
    $region24: #{tpu_custom_call.1} parent=1 // pred_region
      _
    $region25: #{tpu_custom_call.1} parent=1 // pred_fallthru
      _
    // Predicated region
    $region26: #{tpu_custom_call.1} parent=1 // pred_check
      _
    $region27: #{tpu_custom_call.1} parent=1 // pred_check_branch
      %51 = sbr.rel (0) target = $region29
    $region28: #{tpu_custom_call.1} parent=1 // pred_region
      %s53 = ssub.s32 512, 512
      %54 = vsyncadd [#allocation6], %s53
      %s55 = sshll.u32 [#allocation7], 4
      %s56 = int_to_ptr.vmem [resolvable:$true] %s55
      %61 = dma.hbm_to_vmem [thread:$0]  %s6, 512, %s56, [#allocation6], 128, 128, 8
    $region29: #{tpu_custom_call.1} parent=1 // pred_fallthru
      _
    // Predicated region
    $region30: #{tpu_custom_call.1} parent=1 // pred_check
      _
    $region31: #{tpu_custom_call.1} parent=1 // pred_check_branch
      %63 = sbr.rel (0) target = $region33
    $region32: #{tpu_custom_call.1} parent=1 // pred_region
      _
    $region33: #{tpu_custom_call.1} parent=1 // pred_fallthru
      _
    // Predicated region
    $region34: #{tpu_custom_call.1} parent=1 // pred_check
      _
    $region35: #{tpu_custom_call.1} parent=1 // pred_check_branch
      %65 = sbr.rel (0) target = $region37
    $region36: #{tpu_custom_call.1} parent=1 // pred_region
      _
    $region37: #{tpu_custom_call.1} parent=1 // pred_fallthru
      _
    // Predicated region
    $region38: #{tpu_custom_call.1} parent=1 // pred_check
      _
    $region39: #{tpu_custom_call.1} parent=1 // pred_check_branch
      %67 = sbr.rel (0) target = $region41
    $region40: #{tpu_custom_call.1} parent=1 // pred_region
      _
    $region41: #{tpu_custom_call.1} parent=1 // pred_fallthru
      _
    // Predicated region
    $region42: #{tpu_custom_call.1} parent=1 // pred_check
      _
    $region43: #{tpu_custom_call.1} parent=1 // pred_check_branch
      %69 = sbr.rel (0) target = $region45
    $region44: #{tpu_custom_call.1} parent=1 // pred_region
      _
    $region45: #{tpu_custom_call.1} parent=1 // pred_fallthru
      _
    // Predicated region
    $region46: #{tpu_custom_call.1} parent=1 // pred_check
      _
    $region47: #{tpu_custom_call.1} parent=1 // pred_check_branch
      %71 = sbr.rel (0) target = $region49
    $region48: #{tpu_custom_call.1} parent=1 // pred_region
      %72 = dma.done [#allocation4], 256
    $region49: #{tpu_custom_call.1} parent=1 // pred_fallthru
      _
    // Predicated region
    $region50: #{tpu_custom_call.1} parent=1 // pred_check
      _
    $region51: #{tpu_custom_call.1} parent=1 // pred_check_branch
      %74 = sbr.rel (0) target = $region53
    $region52: #{tpu_custom_call.1} parent=1 // pred_region
      %75 = dma.done [#allocation6], 256
    $region53: #{tpu_custom_call.1} parent=1 // pred_fallthru
      _
    // Predicated region
    $region54: #{tpu_custom_call.1} parent=1 // pred_check
      _
    $region55: #{tpu_custom_call.1} parent=1 // pred_check_branch
      %77 = sbr.rel (0) target = $region57
    $region56: #{tpu_custom_call.1} parent=1 // pred_region
      %78 = dma.done [#allocation6], 512
    $region57: #{tpu_custom_call.1} parent=1 // pred_fallthru
      _
    %v79 = vld [vmem:[#allocation3] sm:$0xff]
    %v80 = vld [vmem:[#allocation3 + $0x8] sm:$0xff]
    %v81 = vld [vmem:[#allocation5] sm:$0xff]
    %v82 = vld [vmem:[#allocation5 + $0x8] sm:$0xff]
    %vm83 = vcmask 64512
    %v85 = vsel %vm83, %v81, 0
    %87 = vmatprep.subr.mxu0 0.0
    %88 = vmatpush1.msra.mxu0 0.0
    %89 = vmatprep.subr.mxu0 0.0
    %90 = vmatpush1.msra.mxu0 0.0
    %91 = vmatprep.subr.mxu0 0.0
    %92 = vmatpush1.msra.mxu0 0.0
    %93 = vmatprep.subr.mxu0 0.0
    %94 = vmatpush1.msra.mxu0 0.0
    %95 = vmatprep.subr.mxu0 0.0
    %96 = vmatpush1.msra.mxu0 0.0
    %97 = vmatprep.subr.mxu0 0.0
    %98 = vmatpush1.msra.mxu0 0.0
    %99 = vmatprep.subr.mxu0 0.0
    %100 = vmatpush1.msra.mxu0 0.0
    %101 = vmatprep.subr.mxu0 0.0
    %102 = vmatpush1.msra.mxu0 0.0
    %103 = vmatprep.subr.mxu0 0.0
    %104 = vmatpush1.msra.mxu0 0.0
    %105 = vmatprep.subr.mxu0 0.0
    %106 = vmatpush1.msra.mxu0 0.0
    %107 = vmatprep.subr.mxu0 0.0
    %108 = vmatpush1.msra.mxu0 0.0
    %109 = vmatprep.subr.mxu0 0.0
    %110 = vmatpush1.msra.mxu0 0.0
    %111 = vmatprep.subr.mxu0 0.0
    %112 = vmatpush1.msra.mxu0 0.0
    %113 = vmatprep.subr.mxu0 0.0
    %114 = vmatpush1.msra.mxu0 0.0
    %115 = vmatprep.subr.mxu0 0.0
    %116 = vmatpush1.msra.mxu0 0.0
    %117 = vmatprep.subr.mxu0 0.0
    %118 = vmatpush1.msra.mxu0 %v79
    %119 = vmatprep.subr.mxu0 0.0
    %120 = vmatpush2.msra.mxu0 0.0
    %121 = vmatprep.subr.mxu0 0.0
    %122 = vmatpush2.msra.mxu0 0.0
    %123 = vmatprep.subr.mxu0 0.0
    %124 = vmatpush2.msra.mxu0 0.0
    %125 = vmatprep.subr.mxu0 0.0
    %126 = vmatpush2.msra.mxu0 0.0
    %127 = vmatprep.subr.mxu0 0.0
    %128 = vmatpush2.msra.mxu0 0.0
    %129 = vmatprep.subr.mxu0 0.0
    %130 = vmatpush2.msra.mxu0 0.0
    %131 = vmatprep.subr.mxu0 0.0
    %132 = vmatpush2.msra.mxu0 0.0
    %133 = vmatprep.subr.mxu0 0.0
    %134 = vmatpush2.msra.mxu0 0.0
    %135 = vmatprep.subr.mxu0 0.0
    %136 = vmatpush2.msra.mxu0 0.0
    %137 = vmatprep.subr.mxu0 0.0
    %138 = vmatpush2.msra.mxu0 0.0
    %139 = vmatprep.subr.mxu0 0.0
    %140 = vmatpush2.msra.mxu0 0.0
    %141 = vmatprep.subr.mxu0 0.0
    %142 = vmatpush2.msra.mxu0 0.0
    %143 = vmatprep.subr.mxu0 0.0
    %144 = vmatpush2.msra.mxu0 0.0
    %145 = vmatprep.subr.mxu0 0.0
    %146 = vmatpush2.msra.mxu0 0.0
    %147 = vmatprep.subr.mxu0 0.0
    %148 = vmatpush2.msra.mxu0 0.0
    %149 = vmatprep.subr.mxu0 0.0
    %150 = vmatpush2.msra.mxu0 0.0
    %151 = vmatprep.mubr.f32.mxu0 0.0
    %152 = vmatmul.mubr.f32.gmra.mxu0 %v85
    %v153 = vpop.f32.mrf.mxu0
    %v154 = vadd.f32 0.0, %v153
    %v155 = vpop.f32.mrf.mxu0
    %156 = vdwg.mxu0
    %v158 = vsel %vm83, %v82, 0
    %160 = vmatprep.subr.mxu0 0.0
    %161 = vmatpush1.msra.mxu0 0.0
    %162 = vmatprep.subr.mxu0 0.0
    %163 = vmatpush1.msra.mxu0 0.0
    %164 = vmatprep.subr.mxu0 0.0
    %165 = vmatpush1.msra.mxu0 0.0
    %166 = vmatprep.subr.mxu0 0.0
    %167 = vmatpush1.msra.mxu0 0.0
    %168 = vmatprep.subr.mxu0 0.0
    %169 = vmatpush1.msra.mxu0 0.0
    %170 = vmatprep.subr.mxu0 0.0
    %171 = vmatpush1.msra.mxu0 0.0
    %172 = vmatprep.subr.mxu0 0.0
    %173 = vmatpush1.msra.mxu0 0.0
    %174 = vmatprep.subr.mxu0 0.0
    %175 = vmatpush1.msra.mxu0 0.0
    %176 = vmatprep.subr.mxu0 0.0
    %177 = vmatpush1.msra.mxu0 0.0
    %178 = vmatprep.subr.mxu0 0.0
    %179 = vmatpush1.msra.mxu0 0.0
    %180 = vmatprep.subr.mxu0 0.0
    %181 = vmatpush1.msra.mxu0 0.0
    %182 = vmatprep.subr.mxu0 0.0
    %183 = vmatpush1.msra.mxu0 0.0
    %184 = vmatprep.subr.mxu0 0.0
    %185 = vmatpush1.msra.mxu0 0.0
    %186 = vmatprep.subr.mxu0 0.0
    %187 = vmatpush1.msra.mxu0 0.0
    %188 = vmatprep.subr.mxu0 0.0
    %189 = vmatpush1.msra.mxu0 0.0
    %190 = vmatprep.subr.mxu0 0.0
    %191 = vmatpush1.msra.mxu0 %v80
    %192 = vmatprep.subr.mxu0 0.0
    %193 = vmatpush2.msra.mxu0 0.0
    %194 = vmatprep.subr.mxu0 0.0
    %195 = vmatpush2.msra.mxu0 0.0
    %196 = vmatprep.subr.mxu0 0.0
    %197 = vmatpush2.msra.mxu0 0.0
    %198 = vmatprep.subr.mxu0 0.0
    %199 = vmatpush2.msra.mxu0 0.0
    %200 = vmatprep.subr.mxu0 0.0
    %201 = vmatpush2.msra.mxu0 0.0
    %202 = vmatprep.subr.mxu0 0.0
    %203 = vmatpush2.msra.mxu0 0.0
    %204 = vmatprep.subr.mxu0 0.0
    %205 = vmatpush2.msra.mxu0 0.0
    %206 = vmatprep.subr.mxu0 0.0
    %207 = vmatpush2.msra.mxu0 0.0
    %208 = vmatprep.subr.mxu0 0.0
    %209 = vmatpush2.msra.mxu0 0.0
    %210 = vmatprep.subr.mxu0 0.0
    %211 = vmatpush2.msra.mxu0 0.0
    %212 = vmatprep.subr.mxu0 0.0
    %213 = vmatpush2.msra.mxu0 0.0
    %214 = vmatprep.subr.mxu0 0.0
    %215 = vmatpush2.msra.mxu0 0.0
    %216 = vmatprep.subr.mxu0 0.0
    %217 = vmatpush2.msra.mxu0 0.0
    %218 = vmatprep.subr.mxu0 0.0
    %219 = vmatpush2.msra.mxu0 0.0
    %220 = vmatprep.subr.mxu0 0.0
    %221 = vmatpush2.msra.mxu0 0.0
    %222 = vmatprep.subr.mxu0 0.0
    %223 = vmatpush2.msra.mxu0 0.0
    %224 = vmatprep.mubr.f32.mxu0 0.0
    %225 = vmatmul.mubr.f32.gmra.mxu0 %v158
    %v226 = vpop.f32.mrf.mxu0
    %v227 = vadd.f32 0.0, %v226
    %v228 = vpop.f32.mrf.mxu0
    %229 = vdwg.mxu0
    %v230 = vld [vmem:[%s2] sm:$0xff]
    %v231 = vld [vmem:[%s2 + $0x8] sm:$0xff]
    %v232 = vld [vmem:[%s2 + $0x10] sm:$0xff]
    %v233 = vld [vmem:[%s2 + $0x18] sm:$0xff]
    %v234 = vld [vmem:[%s3] sm:$0x1]
    %v236 = vlaneseq
    %v237 = vshrl.u32 %v236, 7
    %v238 = vsub.s32 0, %v237
    %v239 = vrot.slane %v234, %v238
    %vm241 = vcmask 261120
    %v243 = vsel %vm241, %v154, 0
    %v246 = vsel %vm241, %v227, 0
    %248 = vmatprep.subr.mxu0 0.0
    %249 = vmatpush1.msra.mxu0 0.0
    %250 = vmatprep.subr.mxu0 0.0
    %251 = vmatpush1.msra.mxu0 0.0
    %252 = vmatprep.subr.mxu0 0.0
    %253 = vmatpush1.msra.mxu0 0.0
    %254 = vmatprep.subr.mxu0 0.0
    %255 = vmatpush1.msra.mxu0 0.0
    %256 = vmatprep.subr.mxu0 0.0
    %257 = vmatpush1.msra.mxu0 0.0
    %258 = vmatprep.subr.mxu0 0.0
    %259 = vmatpush1.msra.mxu0 0.0
    %260 = vmatprep.subr.mxu0 0.0
    %261 = vmatpush1.msra.mxu0 0.0
    %262 = vmatprep.subr.mxu0 0.0
    %263 = vmatpush1.msra.mxu0 0.0
    %264 = vmatprep.subr.mxu0 0.0
    %265 = vmatpush1.msra.mxu0 0.0
    %266 = vmatprep.subr.mxu0 0.0
    %267 = vmatpush1.msra.mxu0 0.0
    %268 = vmatprep.subr.mxu0 0.0
    %269 = vmatpush1.msra.mxu0 0.0
    %270 = vmatprep.subr.mxu0 0.0
    %271 = vmatpush1.msra.mxu0 0.0
    %272 = vmatprep.subr.mxu0 0.0
    %273 = vmatpush1.msra.mxu0 %v233
    %274 = vmatprep.subr.mxu0 0.0
    %275 = vmatpush1.msra.mxu0 %v232
    %276 = vmatprep.subr.mxu0 0.0
    %277 = vmatpush1.msra.mxu0 %v231
    %278 = vmatprep.subr.mxu0 0.0
    %279 = vmatpush1.msra.mxu0 %v230
    %280 = vmatprep.subr.mxu0 0.0
    %281 = vmatpush2.msra.mxu0 0.0
    %282 = vmatprep.subr.mxu0 0.0
    %283 = vmatpush2.msra.mxu0 0.0
    %284 = vmatprep.subr.mxu0 0.0
    %285 = vmatpush2.msra.mxu0 0.0
    %286 = vmatprep.subr.mxu0 0.0
    %287 = vmatpush2.msra.mxu0 0.0
    %288 = vmatprep.subr.mxu0 0.0
    %289 = vmatpush2.msra.mxu0 0.0
    %290 = vmatprep.subr.mxu0 0.0
    %291 = vmatpush2.msra.mxu0 0.0
    %292 = vmatprep.subr.mxu0 0.0
    %293 = vmatpush2.msra.mxu0 0.0
    %294 = vmatprep.subr.mxu0 0.0
    %295 = vmatpush2.msra.mxu0 0.0
    %296 = vmatprep.subr.mxu0 0.0
    %297 = vmatpush2.msra.mxu0 0.0
    %298 = vmatprep.subr.mxu0 0.0
    %299 = vmatpush2.msra.mxu0 0.0
    %300 = vmatprep.subr.mxu0 0.0
    %301 = vmatpush2.msra.mxu0 0.0
    %302 = vmatprep.subr.mxu0 0.0
    %303 = vmatpush2.msra.mxu0 0.0
    %304 = vmatprep.subr.mxu0 0.0
    %305 = vmatpush2.msra.mxu0 0.0
    %306 = vmatprep.subr.mxu0 0.0
    %307 = vmatpush2.msra.mxu0 0.0
    %308 = vmatprep.subr.mxu0 0.0
    %309 = vmatpush2.msra.mxu0 0.0
    %310 = vmatprep.subr.mxu0 0.0
    %311 = vmatpush2.msra.mxu0 0.0
    %312 = vmatprep.mubr.f32.mxu0 0.0
    %313 = vmatmul.mubr.f32.gmra.mxu0 %v243
    %v314 = vpop.f32.mrf.mxu0
    %v315 = vadd.f32 %v239, %v314
    %v316 = vpop.f32.mrf.mxu0
    %317 = vmatprep.mubr.f32.mxu0 0.0
    %318 = vmatmul.mubr.f32.gmra.mxu0 %v246
    %v319 = vpop.f32.mrf.mxu0
    %v320 = vadd.f32 %v239, %v319
    %v321 = vpop.f32.mrf.mxu0
    %322 = vdwg.mxu0
    %v323 = vmax.f32 %v315, 0.0
    %v324 = vmax.f32 %v320, 0.0
    %v325 = vld [vmem:[%s8] sm:$0xff]
    %v326 = vld [vmem:[%s8 + $0x8] sm:$0xff]
    %v327 = vld [vmem:[%s8 + $0x10] sm:$0xff]
    %v328 = vld [vmem:[%s8 + $0x18] sm:$0xff]
    %v330 = vsel %vm241, %v323, 0
    %v333 = vsel %vm241, %v324, 0
    %335 = vmatprep.subr.mxu0 0.0
    %336 = vmatpush1.msra.mxu0 0.0
    %337 = vmatprep.subr.mxu0 0.0
    %338 = vmatpush1.msra.mxu0 0.0
    %339 = vmatprep.subr.mxu0 0.0
    %340 = vmatpush1.msra.mxu0 0.0
    %341 = vmatprep.subr.mxu0 0.0
    %342 = vmatpush1.msra.mxu0 0.0
    %343 = vmatprep.subr.mxu0 0.0
    %344 = vmatpush1.msra.mxu0 0.0
    %345 = vmatprep.subr.mxu0 0.0
    %346 = vmatpush1.msra.mxu0 0.0
    %347 = vmatprep.subr.mxu0 0.0
    %348 = vmatpush1.msra.mxu0 0.0
    %349 = vmatprep.subr.mxu0 0.0
    %350 = vmatpush1.msra.mxu0 0.0
    %351 = vmatprep.subr.mxu0 0.0
    %352 = vmatpush1.msra.mxu0 0.0
    %353 = vmatprep.subr.mxu0 0.0
    %354 = vmatpush1.msra.mxu0 0.0
    %355 = vmatprep.subr.mxu0 0.0
    %356 = vmatpush1.msra.mxu0 0.0
    %357 = vmatprep.subr.mxu0 0.0
    %358 = vmatpush1.msra.mxu0 0.0
    %359 = vmatprep.subr.mxu0 0.0
    %360 = vmatpush1.msra.mxu0 %v328
    %361 = vmatprep.subr.mxu0 0.0
    %362 = vmatpush1.msra.mxu0 %v327
    %363 = vmatprep.subr.mxu0 0.0
    %364 = vmatpush1.msra.mxu0 %v326
    %365 = vmatprep.subr.mxu0 0.0
    %366 = vmatpush1.msra.mxu0 %v325
    %367 = vmatprep.subr.mxu0 0.0
    %368 = vmatpush2.msra.mxu0 0.0
    %369 = vmatprep.subr.mxu0 0.0
    %370 = vmatpush2.msra.mxu0 0.0
    %371 = vmatprep.subr.mxu0 0.0
    %372 = vmatpush2.msra.mxu0 0.0
    %373 = vmatprep.subr.mxu0 0.0
    %374 = vmatpush2.msra.mxu0 0.0
    %375 = vmatprep.subr.mxu0 0.0
    %376 = vmatpush2.msra.mxu0 0.0
    %377 = vmatprep.subr.mxu0 0.0
    %378 = vmatpush2.msra.mxu0 0.0
    %379 = vmatprep.subr.mxu0 0.0
    %380 = vmatpush2.msra.mxu0 0.0
    %381 = vmatprep.subr.mxu0 0.0
    %382 = vmatpush2.msra.mxu0 0.0
    %383 = vmatprep.subr.mxu0 0.0
    %384 = vmatpush2.msra.mxu0 0.0
    %385 = vmatprep.subr.mxu0 0.0
    %386 = vmatpush2.msra.mxu0 0.0
    %387 = vmatprep.subr.mxu0 0.0
    %388 = vmatpush2.msra.mxu0 0.0
    %389 = vmatprep.subr.mxu0 0.0
    %390 = vmatpush2.msra.mxu0 0.0
    %391 = vmatprep.subr.mxu0 0.0
    %392 = vmatpush2.msra.mxu0 0.0
    %393 = vmatprep.subr.mxu0 0.0
    %394 = vmatpush2.msra.mxu0 0.0
    %395 = vmatprep.subr.mxu0 0.0
    %396 = vmatpush2.msra.mxu0 0.0
    %397 = vmatprep.subr.mxu0 0.0
    %398 = vmatpush2.msra.mxu0 0.0
    %399 = vmatprep.mubr.f32.mxu0 0.0
    %400 = vmatmul.mubr.f32.gmra.mxu0 %v330
    %v401 = vpop.f32.mrf.mxu0
    %v402 = vadd.f32 0.0, %v401
    %v403 = vpop.f32.mrf.mxu0
    %404 = vmatprep.mubr.f32.mxu0 0.0
    %405 = vmatmul.mubr.f32.gmra.mxu0 %v333
    %v406 = vpop.f32.mrf.mxu0
    %v407 = vadd.f32 0.0, %v406
    %v408 = vpop.f32.mrf.mxu0
    %409 = vdwg.mxu0
    %v410 = vld [vmem:[%s4] sm:$0xff]
    %v411 = vld [vmem:[%s4 + $0x8] sm:$0xff]
    %v412 = vld [vmem:[%s4 + $0x10] sm:$0xff]
    %v413 = vld [vmem:[%s4 + $0x18] sm:$0xff]
    %v414 = vld [vmem:[%s5] sm:$0x1]
    %v416 = vlaneseq
    %v417 = vshrl.u32 %v416, 7
    %v418 = vsub.s32 0, %v417
    %v419 = vrot.slane %v414, %v418
    %421 = vmatprep.subr.mxu0 0.0
    %422 = vmatpush1.msra.mxu0 0.0
    %423 = vmatprep.subr.mxu0 0.0
    %424 = vmatpush1.msra.mxu0 0.0
    %425 = vmatprep.subr.mxu0 0.0
    %426 = vmatpush1.msra.mxu0 0.0
    %427 = vmatprep.subr.mxu0 0.0
    %428 = vmatpush1.msra.mxu0 0.0
    %429 = vmatprep.subr.mxu0 0.0
    %430 = vmatpush1.msra.mxu0 0.0
    %431 = vmatprep.subr.mxu0 0.0
    %432 = vmatpush1.msra.mxu0 0.0
    %433 = vmatprep.subr.mxu0 0.0
    %434 = vmatpush1.msra.mxu0 0.0
    %435 = vmatprep.subr.mxu0 0.0
    %436 = vmatpush1.msra.mxu0 0.0
    %437 = vmatprep.subr.mxu0 0.0
    %438 = vmatpush1.msra.mxu0 0.0
    %439 = vmatprep.subr.mxu0 0.0
    %440 = vmatpush1.msra.mxu0 0.0
    %441 = vmatprep.subr.mxu0 0.0
    %442 = vmatpush1.msra.mxu0 0.0
    %443 = vmatprep.subr.mxu0 0.0
    %444 = vmatpush1.msra.mxu0 0.0
    %445 = vmatprep.subr.mxu0 0.0
    %446 = vmatpush1.msra.mxu0 %v413
    %447 = vmatprep.subr.mxu0 0.0
    %448 = vmatpush1.msra.mxu0 %v412
    %449 = vmatprep.subr.mxu0 0.0
    %450 = vmatpush1.msra.mxu0 %v411
    %451 = vmatprep.subr.mxu0 0.0
    %452 = vmatpush1.msra.mxu0 %v410
    %453 = vmatprep.subr.mxu0 0.0
    %454 = vmatpush2.msra.mxu0 0.0
    %455 = vmatprep.subr.mxu0 0.0
    %456 = vmatpush2.msra.mxu0 0.0
    %457 = vmatprep.subr.mxu0 0.0
    %458 = vmatpush2.msra.mxu0 0.0
    %459 = vmatprep.subr.mxu0 0.0
    %460 = vmatpush2.msra.mxu0 0.0
    %461 = vmatprep.subr.mxu0 0.0
    %462 = vmatpush2.msra.mxu0 0.0
    %463 = vmatprep.subr.mxu0 0.0
    %464 = vmatpush2.msra.mxu0 0.0
    %465 = vmatprep.subr.mxu0 0.0
    %466 = vmatpush2.msra.mxu0 0.0
    %467 = vmatprep.subr.mxu0 0.0
    %468 = vmatpush2.msra.mxu0 0.0
    %469 = vmatprep.subr.mxu0 0.0
    %470 = vmatpush2.msra.mxu0 0.0
    %471 = vmatprep.subr.mxu0 0.0
    %472 = vmatpush2.msra.mxu0 0.0
    %473 = vmatprep.subr.mxu0 0.0
    %474 = vmatpush2.msra.mxu0 0.0
    %475 = vmatprep.subr.mxu0 0.0
    %476 = vmatpush2.msra.mxu0 0.0
    %477 = vmatprep.subr.mxu0 0.0
    %478 = vmatpush2.msra.mxu0 0.0
    %479 = vmatprep.subr.mxu0 0.0
    %480 = vmatpush2.msra.mxu0 0.0
    %481 = vmatprep.subr.mxu0 0.0
    %482 = vmatpush2.msra.mxu0 0.0
    %483 = vmatprep.subr.mxu0 0.0
    %484 = vmatpush2.msra.mxu0 0.0
    %485 = vmatprep.mubr.f32.mxu0 0.0
    %486 = vmatmul.mubr.f32.gmra.mxu0 %v330
    %v487 = vpop.f32.mrf.mxu0
    %v488 = vadd.f32 %v419, %v487
    %v489 = vpop.f32.mrf.mxu0
    %490 = vmatprep.mubr.f32.mxu0 0.0
    %491 = vmatmul.mubr.f32.gmra.mxu0 %v333
    %v492 = vpop.f32.mrf.mxu0
    %v493 = vadd.f32 %v419, %v492
    %v494 = vpop.f32.mrf.mxu0
    %495 = vdwg.mxu0
    %497 = vrot.lane.b32.xlu0 %v488, 96
    %v498 = vpop.permute.xlu0 %497
    %v499 = vsel %vm83, %v488, 0
    %v501 = vsel %vm83, %v498, 0
    %503 = vmatprep.subr.mxu0 0.0
    %504 = vmatpush1.xpose.msra.mxu0 0.0
    %505 = vmatprep.subr.mxu0 0.0
    %506 = vmatpush1.xpose.msra.mxu0 0.0
    %507 = vmatprep.subr.mxu0 0.0
    %508 = vmatpush1.xpose.msra.mxu0 0.0
    %509 = vmatprep.subr.mxu0 0.0
    %510 = vmatpush1.xpose.msra.mxu0 0.0
    %511 = vmatprep.subr.mxu0 0.0
    %512 = vmatpush1.xpose.msra.mxu0 0.0
    %513 = vmatprep.subr.mxu0 0.0
    %514 = vmatpush1.xpose.msra.mxu0 0.0
    %515 = vmatprep.subr.mxu0 0.0
    %516 = vmatpush1.xpose.msra.mxu0 0.0
    %517 = vmatprep.subr.mxu0 0.0
    %518 = vmatpush1.xpose.msra.mxu0 0.0
    %519 = vmatprep.subr.mxu0 0.0
    %520 = vmatpush1.xpose.msra.mxu0 0.0
    %521 = vmatprep.subr.mxu0 0.0
    %522 = vmatpush1.xpose.msra.mxu0 0.0
    %523 = vmatprep.subr.mxu0 0.0
    %524 = vmatpush1.xpose.msra.mxu0 0.0
    %525 = vmatprep.subr.mxu0 0.0
    %526 = vmatpush1.xpose.msra.mxu0 0.0
    %527 = vmatprep.subr.mxu0 0.0
    %528 = vmatpush1.xpose.msra.mxu0 0.0
    %529 = vmatprep.subr.mxu0 0.0
    %530 = vmatpush1.xpose.msra.mxu0 0.0
    %531 = vmatprep.subr.mxu0 0.0
    %532 = vmatpush1.xpose.msra.mxu0 0.0
    %533 = vmatprep.subr.mxu0 0.0
    %534 = vmatpush1.xpose.msra.mxu0 %v501
    %535 = vmatprep.subr.mxu0 0.0
    %536 = vmatpush2.xpose.msra.mxu0 0.0
    %537 = vmatprep.subr.mxu0 0.0
    %538 = vmatpush2.xpose.msra.mxu0 0.0
    %539 = vmatprep.subr.mxu0 0.0
    %540 = vmatpush2.xpose.msra.mxu0 0.0
    %541 = vmatprep.subr.mxu0 0.0
    %542 = vmatpush2.xpose.msra.mxu0 0.0
    %543 = vmatprep.subr.mxu0 0.0
    %544 = vmatpush2.xpose.msra.mxu0 0.0
    %545 = vmatprep.subr.mxu0 0.0
    %546 = vmatpush2.xpose.msra.mxu0 0.0
    %547 = vmatprep.subr.mxu0 0.0
    %548 = vmatpush2.xpose.msra.mxu0 0.0
    %549 = vmatprep.subr.mxu0 0.0
    %550 = vmatpush2.xpose.msra.mxu0 0.0
    %551 = vmatprep.subr.mxu0 0.0
    %552 = vmatpush2.xpose.msra.mxu0 0.0
    %553 = vmatprep.subr.mxu0 0.0
    %554 = vmatpush2.xpose.msra.mxu0 0.0
    %555 = vmatprep.subr.mxu0 0.0
    %556 = vmatpush2.xpose.msra.mxu0 0.0
    %557 = vmatprep.subr.mxu0 0.0
    %558 = vmatpush2.xpose.msra.mxu0 0.0
    %559 = vmatprep.subr.mxu0 0.0
    %560 = vmatpush2.xpose.msra.mxu0 0.0
    %561 = vmatprep.subr.mxu0 0.0
    %562 = vmatpush2.xpose.msra.mxu0 0.0
    %563 = vmatprep.subr.mxu0 0.0
    %564 = vmatpush2.xpose.msra.mxu0 0.0
    %565 = vmatprep.subr.mxu0 0.0
    %566 = vmatpush2.xpose.msra.mxu0 0.0
    %567 = vmatprep.mubr.f32.mxu0 0.0
    %568 = vmatmul.mubr.f32.gmra.mxu0 %v499
    %v569 = vpop.f32.mrf.mxu0
    %v570 = vadd.f32 0.0, %v569
    %v571 = vpop.f32.mrf.mxu0
    %572 = vdwg.mxu0
    %574 = vrot.lane.b32.xlu0 %v493, 96
    %v575 = vpop.permute.xlu0 %574
    %v576 = vsel %vm83, %v493, 0
    %v578 = vsel %vm83, %v575, 0
    %580 = vmatprep.subr.mxu0 0.0
    %581 = vmatpush1.xpose.msra.mxu0 0.0
    %582 = vmatprep.subr.mxu0 0.0
    %583 = vmatpush1.xpose.msra.mxu0 0.0
    %584 = vmatprep.subr.mxu0 0.0
    %585 = vmatpush1.xpose.msra.mxu0 0.0
    %586 = vmatprep.subr.mxu0 0.0
    %587 = vmatpush1.xpose.msra.mxu0 0.0
    %588 = vmatprep.subr.mxu0 0.0
    %589 = vmatpush1.xpose.msra.mxu0 0.0
    %590 = vmatprep.subr.mxu0 0.0
    %591 = vmatpush1.xpose.msra.mxu0 0.0
    %592 = vmatprep.subr.mxu0 0.0
    %593 = vmatpush1.xpose.msra.mxu0 0.0
    %594 = vmatprep.subr.mxu0 0.0
    %595 = vmatpush1.xpose.msra.mxu0 0.0
    %596 = vmatprep.subr.mxu0 0.0
    %597 = vmatpush1.xpose.msra.mxu0 0.0
    %598 = vmatprep.subr.mxu0 0.0
    %599 = vmatpush1.xpose.msra.mxu0 0.0
    %600 = vmatprep.subr.mxu0 0.0
    %601 = vmatpush1.xpose.msra.mxu0 0.0
    %602 = vmatprep.subr.mxu0 0.0
    %603 = vmatpush1.xpose.msra.mxu0 0.0
    %604 = vmatprep.subr.mxu0 0.0
    %605 = vmatpush1.xpose.msra.mxu0 0.0
    %606 = vmatprep.subr.mxu0 0.0
    %607 = vmatpush1.xpose.msra.mxu0 0.0
    %608 = vmatprep.subr.mxu0 0.0
    %609 = vmatpush1.xpose.msra.mxu0 0.0
    %610 = vmatprep.subr.mxu0 0.0
    %611 = vmatpush1.xpose.msra.mxu0 %v578
    %612 = vmatprep.subr.mxu0 0.0
    %613 = vmatpush2.xpose.msra.mxu0 0.0
    %614 = vmatprep.subr.mxu0 0.0
    %615 = vmatpush2.xpose.msra.mxu0 0.0
    %616 = vmatprep.subr.mxu0 0.0
    %617 = vmatpush2.xpose.msra.mxu0 0.0
    %618 = vmatprep.subr.mxu0 0.0
    %619 = vmatpush2.xpose.msra.mxu0 0.0
    %620 = vmatprep.subr.mxu0 0.0
    %621 = vmatpush2.xpose.msra.mxu0 0.0
    %622 = vmatprep.subr.mxu0 0.0
    %623 = vmatpush2.xpose.msra.mxu0 0.0
    %624 = vmatprep.subr.mxu0 0.0
    %625 = vmatpush2.xpose.msra.mxu0 0.0
    %626 = vmatprep.subr.mxu0 0.0
    %627 = vmatpush2.xpose.msra.mxu0 0.0
    %628 = vmatprep.subr.mxu0 0.0
    %629 = vmatpush2.xpose.msra.mxu0 0.0
    %630 = vmatprep.subr.mxu0 0.0
    %631 = vmatpush2.xpose.msra.mxu0 0.0
    %632 = vmatprep.subr.mxu0 0.0
    %633 = vmatpush2.xpose.msra.mxu0 0.0
    %634 = vmatprep.subr.mxu0 0.0
    %635 = vmatpush2.xpose.msra.mxu0 0.0
    %636 = vmatprep.subr.mxu0 0.0
    %637 = vmatpush2.xpose.msra.mxu0 0.0
    %638 = vmatprep.subr.mxu0 0.0
    %639 = vmatpush2.xpose.msra.mxu0 0.0
    %640 = vmatprep.subr.mxu0 0.0
    %641 = vmatpush2.xpose.msra.mxu0 0.0
    %642 = vmatprep.subr.mxu0 0.0
    %643 = vmatpush2.xpose.msra.mxu0 0.0
    %644 = vmatprep.mubr.f32.mxu0 0.0
    %645 = vmatmul.mubr.f32.gmra.mxu0 %v576
    %v646 = vpop.f32.mrf.mxu0
    %v647 = vadd.f32 0.0, %v646
    %v648 = vpop.f32.mrf.mxu0
    %649 = vdwg.mxu0
    %v650 = vsel %vm83, %v570, -inf
    %651 = vmax.xlane.f32.xlu0 %v650
    %v652 = vpop.xlane.xlu0 %651
    %v653 = vsel %vm83, %v647, -inf
    %654 = vmax.xlane.f32.xlu0 %v653
    %v655 = vpop.xlane.xlu0 %654
    %v656 = vsub.f32 %v570, %v652
    %v657 = vsub.f32 %v647, %v655
    %v658 = vmul.f32 %v656, 1.442695
    %v659 = vpow.pop %v658
    %v660 = vmul.f32 %v657, 1.442695
    %v661 = vpow.pop %v660
    %v662 = vsel %vm83, %v659, 0.0
    %663 = vadd.xlane.f32.xlu0 %v662
    %v664 = vpop.xlane.xlu0 %663
    %v665 = vsel %vm83, %v661, 0.0
    %666 = vadd.xlane.f32.xlu0 %v665
    %v667 = vpop.xlane.xlu0 %666
    %v668 = vrcp.pop %v664
    %v669 = vrcp.pop %v667
    %v670 = vmul.f32 %v659, %v668
    %v671 = vmul.f32 %v661, %v669
    %672 = vrot.lane.b32.xlu0 %v488, 64
    %v673 = vpop.permute.xlu0 %672
    %v676 = vsel %vm83, %v670, 0
    %678 = vmatprep.subr.mxu0 0.0
    %679 = vmatpush1.msra.mxu0 0.0
    %680 = vmatprep.subr.mxu0 0.0
    %681 = vmatpush1.msra.mxu0 0.0
    %682 = vmatprep.subr.mxu0 0.0
    %683 = vmatpush1.msra.mxu0 0.0
    %684 = vmatprep.subr.mxu0 0.0
    %685 = vmatpush1.msra.mxu0 0.0
    %686 = vmatprep.subr.mxu0 0.0
    %687 = vmatpush1.msra.mxu0 0.0
    %688 = vmatprep.subr.mxu0 0.0
    %689 = vmatpush1.msra.mxu0 0.0
    %690 = vmatprep.subr.mxu0 0.0
    %691 = vmatpush1.msra.mxu0 0.0
    %692 = vmatprep.subr.mxu0 0.0
    %693 = vmatpush1.msra.mxu0 0.0
    %694 = vmatprep.subr.mxu0 0.0
    %695 = vmatpush1.msra.mxu0 0.0
    %696 = vmatprep.subr.mxu0 0.0
    %697 = vmatpush1.msra.mxu0 0.0
    %698 = vmatprep.subr.mxu0 0.0
    %699 = vmatpush1.msra.mxu0 0.0
    %700 = vmatprep.subr.mxu0 0.0
    %701 = vmatpush1.msra.mxu0 0.0
    %702 = vmatprep.subr.mxu0 0.0
    %703 = vmatpush1.msra.mxu0 0.0
    %704 = vmatprep.subr.mxu0 0.0
    %705 = vmatpush1.msra.mxu0 0.0
    %706 = vmatprep.subr.mxu0 0.0
    %707 = vmatpush1.msra.mxu0 0.0
    %708 = vmatprep.subr.mxu0 0.0
    %709 = vmatpush1.msra.mxu0 %v673
    %710 = vmatprep.subr.mxu0 0.0
    %711 = vmatpush2.msra.mxu0 0.0
    %712 = vmatprep.subr.mxu0 0.0
    %713 = vmatpush2.msra.mxu0 0.0
    %714 = vmatprep.subr.mxu0 0.0
    %715 = vmatpush2.msra.mxu0 0.0
    %716 = vmatprep.subr.mxu0 0.0
    %717 = vmatpush2.msra.mxu0 0.0
    %718 = vmatprep.subr.mxu0 0.0
    %719 = vmatpush2.msra.mxu0 0.0
    %720 = vmatprep.subr.mxu0 0.0
    %721 = vmatpush2.msra.mxu0 0.0
    %722 = vmatprep.subr.mxu0 0.0
    %723 = vmatpush2.msra.mxu0 0.0
    %724 = vmatprep.subr.mxu0 0.0
    %725 = vmatpush2.msra.mxu0 0.0
    %726 = vmatprep.subr.mxu0 0.0
    %727 = vmatpush2.msra.mxu0 0.0
    %728 = vmatprep.subr.mxu0 0.0
    %729 = vmatpush2.msra.mxu0 0.0
    %730 = vmatprep.subr.mxu0 0.0
    %731 = vmatpush2.msra.mxu0 0.0
    %732 = vmatprep.subr.mxu0 0.0
    %733 = vmatpush2.msra.mxu0 0.0
    %734 = vmatprep.subr.mxu0 0.0
    %735 = vmatpush2.msra.mxu0 0.0
    %736 = vmatprep.subr.mxu0 0.0
    %737 = vmatpush2.msra.mxu0 0.0
    %738 = vmatprep.subr.mxu0 0.0
    %739 = vmatpush2.msra.mxu0 0.0
    %740 = vmatprep.subr.mxu0 0.0
    %741 = vmatpush2.msra.mxu0 0.0
    %742 = vmatprep.mubr.f32.mxu0 0.0
    %743 = vmatmul.mubr.f32.gmra.mxu0 %v676
    %v744 = vpop.f32.mrf.mxu0
    %v745 = vadd.f32 0.0, %v744
    %v746 = vpop.f32.mrf.mxu0
    %747 = vdwg.mxu0
    %748 = vrot.lane.b32.xlu0 %v493, 64
    %v749 = vpop.permute.xlu0 %748
    %v752 = vsel %vm83, %v671, 0
    %754 = vmatprep.subr.mxu0 0.0
    %755 = vmatpush1.msra.mxu0 0.0
    %756 = vmatprep.subr.mxu0 0.0
    %757 = vmatpush1.msra.mxu0 0.0
    %758 = vmatprep.subr.mxu0 0.0
    %759 = vmatpush1.msra.mxu0 0.0
    %760 = vmatprep.subr.mxu0 0.0
    %761 = vmatpush1.msra.mxu0 0.0
    %762 = vmatprep.subr.mxu0 0.0
    %763 = vmatpush1.msra.mxu0 0.0
    %764 = vmatprep.subr.mxu0 0.0
    %765 = vmatpush1.msra.mxu0 0.0
    %766 = vmatprep.subr.mxu0 0.0
    %767 = vmatpush1.msra.mxu0 0.0
    %768 = vmatprep.subr.mxu0 0.0
    %769 = vmatpush1.msra.mxu0 0.0
    %770 = vmatprep.subr.mxu0 0.0
    %771 = vmatpush1.msra.mxu0 0.0
    %772 = vmatprep.subr.mxu0 0.0
    %773 = vmatpush1.msra.mxu0 0.0
    %774 = vmatprep.subr.mxu0 0.0
    %775 = vmatpush1.msra.mxu0 0.0
    %776 = vmatprep.subr.mxu0 0.0
    %777 = vmatpush1.msra.mxu0 0.0
    %778 = vmatprep.subr.mxu0 0.0
    %779 = vmatpush1.msra.mxu0 0.0
    %780 = vmatprep.subr.mxu0 0.0
    %781 = vmatpush1.msra.mxu0 0.0
    %782 = vmatprep.subr.mxu0 0.0
    %783 = vmatpush1.msra.mxu0 0.0
    %784 = vmatprep.subr.mxu0 0.0
    %785 = vmatpush1.msra.mxu0 %v749
    %786 = vmatprep.subr.mxu0 0.0
    %787 = vmatpush2.msra.mxu0 0.0
    %788 = vmatprep.subr.mxu0 0.0
    %789 = vmatpush2.msra.mxu0 0.0
    %790 = vmatprep.subr.mxu0 0.0
    %791 = vmatpush2.msra.mxu0 0.0
    %792 = vmatprep.subr.mxu0 0.0
    %793 = vmatpush2.msra.mxu0 0.0
    %794 = vmatprep.subr.mxu0 0.0
    %795 = vmatpush2.msra.mxu0 0.0
    %796 = vmatprep.subr.mxu0 0.0
    %797 = vmatpush2.msra.mxu0 0.0
    %798 = vmatprep.subr.mxu0 0.0
    %799 = vmatpush2.msra.mxu0 0.0
    %800 = vmatprep.subr.mxu0 0.0
    %801 = vmatpush2.msra.mxu0 0.0
    %802 = vmatprep.subr.mxu0 0.0
    %803 = vmatpush2.msra.mxu0 0.0
    %804 = vmatprep.subr.mxu0 0.0
    %805 = vmatpush2.msra.mxu0 0.0
    %806 = vmatprep.subr.mxu0 0.0
    %807 = vmatpush2.msra.mxu0 0.0
    %808 = vmatprep.subr.mxu0 0.0
    %809 = vmatpush2.msra.mxu0 0.0
    %810 = vmatprep.subr.mxu0 0.0
    %811 = vmatpush2.msra.mxu0 0.0
    %812 = vmatprep.subr.mxu0 0.0
    %813 = vmatpush2.msra.mxu0 0.0
    %814 = vmatprep.subr.mxu0 0.0
    %815 = vmatpush2.msra.mxu0 0.0
    %816 = vmatprep.subr.mxu0 0.0
    %817 = vmatpush2.msra.mxu0 0.0
    %818 = vmatprep.mubr.f32.mxu0 0.0
    %819 = vmatmul.mubr.f32.gmra.mxu0 %v752
    %v820 = vpop.f32.mrf.mxu0
    %v821 = vadd.f32 0.0, %v820
    %v822 = vpop.f32.mrf.mxu0
    %823 = vdwg.mxu0
    %824 = vst.msk [vmem:[#allocation2] sm:$0xff] %vm83, %v745
    %825 = vst.msk [vmem:[#allocation2 + $0x8] sm:$0xff] %vm83, %v821
    %826 = vrot.lane.b32.xlu0 %v488, 120
    %v827 = vpop.permute.xlu0 %826
    %828 = vrot.lane.b32.xlu0 %v488, 88
    %v829 = vpop.permute.xlu0 %828
    %v830 = vsel %vm83, %v827, 0
    %v832 = vsel %vm83, %v829, 0
    %834 = vmatprep.subr.mxu0 0.0
    %835 = vmatpush1.xpose.msra.mxu0 0.0
    %836 = vmatprep.subr.mxu0 0.0
    %837 = vmatpush1.xpose.msra.mxu0 0.0
    %838 = vmatprep.subr.mxu0 0.0
    %839 = vmatpush1.xpose.msra.mxu0 0.0
    %840 = vmatprep.subr.mxu0 0.0
    %841 = vmatpush1.xpose.msra.mxu0 0.0
    %842 = vmatprep.subr.mxu0 0.0
    %843 = vmatpush1.xpose.msra.mxu0 0.0
    %844 = vmatprep.subr.mxu0 0.0
    %845 = vmatpush1.xpose.msra.mxu0 0.0
    %846 = vmatprep.subr.mxu0 0.0
    %847 = vmatpush1.xpose.msra.mxu0 0.0
    %848 = vmatprep.subr.mxu0 0.0
    %849 = vmatpush1.xpose.msra.mxu0 0.0
    %850 = vmatprep.subr.mxu0 0.0
    %851 = vmatpush1.xpose.msra.mxu0 0.0
    %852 = vmatprep.subr.mxu0 0.0
    %853 = vmatpush1.xpose.msra.mxu0 0.0
    %854 = vmatprep.subr.mxu0 0.0
    %855 = vmatpush1.xpose.msra.mxu0 0.0
    %856 = vmatprep.subr.mxu0 0.0
    %857 = vmatpush1.xpose.msra.mxu0 0.0
    %858 = vmatprep.subr.mxu0 0.0
    %859 = vmatpush1.xpose.msra.mxu0 0.0
    %860 = vmatprep.subr.mxu0 0.0
    %861 = vmatpush1.xpose.msra.mxu0 0.0
    %862 = vmatprep.subr.mxu0 0.0
    %863 = vmatpush1.xpose.msra.mxu0 0.0
    %864 = vmatprep.subr.mxu0 0.0
    %865 = vmatpush1.xpose.msra.mxu0 %v832
    %866 = vmatprep.subr.mxu0 0.0
    %867 = vmatpush2.xpose.msra.mxu0 0.0
    %868 = vmatprep.subr.mxu0 0.0
    %869 = vmatpush2.xpose.msra.mxu0 0.0
    %870 = vmatprep.subr.mxu0 0.0
    %871 = vmatpush2.xpose.msra.mxu0 0.0
    %872 = vmatprep.subr.mxu0 0.0
    %873 = vmatpush2.xpose.msra.mxu0 0.0
    %874 = vmatprep.subr.mxu0 0.0
    %875 = vmatpush2.xpose.msra.mxu0 0.0
    %876 = vmatprep.subr.mxu0 0.0
    %877 = vmatpush2.xpose.msra.mxu0 0.0
    %878 = vmatprep.subr.mxu0 0.0
    %879 = vmatpush2.xpose.msra.mxu0 0.0
    %880 = vmatprep.subr.mxu0 0.0
    %881 = vmatpush2.xpose.msra.mxu0 0.0
    %882 = vmatprep.subr.mxu0 0.0
    %883 = vmatpush2.xpose.msra.mxu0 0.0
    %884 = vmatprep.subr.mxu0 0.0
    %885 = vmatpush2.xpose.msra.mxu0 0.0
    %886 = vmatprep.subr.mxu0 0.0
    %887 = vmatpush2.xpose.msra.mxu0 0.0
    %888 = vmatprep.subr.mxu0 0.0
    %889 = vmatpush2.xpose.msra.mxu0 0.0
    %890 = vmatprep.subr.mxu0 0.0
    %891 = vmatpush2.xpose.msra.mxu0 0.0
    %892 = vmatprep.subr.mxu0 0.0
    %893 = vmatpush2.xpose.msra.mxu0 0.0
    %894 = vmatprep.subr.mxu0 0.0
    %895 = vmatpush2.xpose.msra.mxu0 0.0
    %896 = vmatprep.subr.mxu0 0.0
    %897 = vmatpush2.xpose.msra.mxu0 0.0
    %898 = vmatprep.mubr.f32.mxu0 0.0
    %899 = vmatmul.mubr.f32.gmra.mxu0 %v830
    %v900 = vpop.f32.mrf.mxu0
    %v901 = vadd.f32 0.0, %v900
    %v902 = vpop.f32.mrf.mxu0
    %903 = vdwg.mxu0
    %904 = vrot.lane.b32.xlu0 %v493, 120
    %v905 = vpop.permute.xlu0 %904
    %906 = vrot.lane.b32.xlu0 %v493, 88
    %v907 = vpop.permute.xlu0 %906
    %v908 = vsel %vm83, %v905, 0
    %v910 = vsel %vm83, %v907, 0
    %912 = vmatprep.subr.mxu0 0.0
    %913 = vmatpush1.xpose.msra.mxu0 0.0
    %914 = vmatprep.subr.mxu0 0.0
    %915 = vmatpush1.xpose.msra.mxu0 0.0
    %916 = vmatprep.subr.mxu0 0.0
    %917 = vmatpush1.xpose.msra.mxu0 0.0
    %918 = vmatprep.subr.mxu0 0.0
    %919 = vmatpush1.xpose.msra.mxu0 0.0
    %920 = vmatprep.subr.mxu0 0.0
    %921 = vmatpush1.xpose.msra.mxu0 0.0
    %922 = vmatprep.subr.mxu0 0.0
    %923 = vmatpush1.xpose.msra.mxu0 0.0
    %924 = vmatprep.subr.mxu0 0.0
    %925 = vmatpush1.xpose.msra.mxu0 0.0
    %926 = vmatprep.subr.mxu0 0.0
    %927 = vmatpush1.xpose.msra.mxu0 0.0
    %928 = vmatprep.subr.mxu0 0.0
    %929 = vmatpush1.xpose.msra.mxu0 0.0
    %930 = vmatprep.subr.mxu0 0.0
    %931 = vmatpush1.xpose.msra.mxu0 0.0
    %932 = vmatprep.subr.mxu0 0.0
    %933 = vmatpush1.xpose.msra.mxu0 0.0
    %934 = vmatprep.subr.mxu0 0.0
    %935 = vmatpush1.xpose.msra.mxu0 0.0
    %936 = vmatprep.subr.mxu0 0.0
    %937 = vmatpush1.xpose.msra.mxu0 0.0
    %938 = vmatprep.subr.mxu0 0.0
    %939 = vmatpush1.xpose.msra.mxu0 0.0
    %940 = vmatprep.subr.mxu0 0.0
    %941 = vmatpush1.xpose.msra.mxu0 0.0
    %942 = vmatprep.subr.mxu0 0.0
    %943 = vmatpush1.xpose.msra.mxu0 %v910
    %944 = vmatprep.subr.mxu0 0.0
    %945 = vmatpush2.xpose.msra.mxu0 0.0
    %946 = vmatprep.subr.mxu0 0.0
    %947 = vmatpush2.xpose.msra.mxu0 0.0
    %948 = vmatprep.subr.mxu0 0.0
    %949 = vmatpush2.xpose.msra.mxu0 0.0
    %950 = vmatprep.subr.mxu0 0.0
    %951 = vmatpush2.xpose.msra.mxu0 0.0
    %952 = vmatprep.subr.mxu0 0.0
    %953 = vmatpush2.xpose.msra.mxu0 0.0
    %954 = vmatprep.subr.mxu0 0.0
    %955 = vmatpush2.xpose.msra.mxu0 0.0
    %956 = vmatprep.subr.mxu0 0.0
    %957 = vmatpush2.xpose.msra.mxu0 0.0
    %958 = vmatprep.subr.mxu0 0.0
    %959 = vmatpush2.xpose.msra.mxu0 0.0
    %960 = vmatprep.subr.mxu0 0.0
    %961 = vmatpush2.xpose.msra.mxu0 0.0
    %962 = vmatprep.subr.mxu0 0.0
    %963 = vmatpush2.xpose.msra.mxu0 0.0
    %964 = vmatprep.subr.mxu0 0.0
    %965 = vmatpush2.xpose.msra.mxu0 0.0
    %966 = vmatprep.subr.mxu0 0.0
    %967 = vmatpush2.xpose.msra.mxu0 0.0
    %968 = vmatprep.subr.mxu0 0.0
    %969 = vmatpush2.xpose.msra.mxu0 0.0
    %970 = vmatprep.subr.mxu0 0.0
    %971 = vmatpush2.xpose.msra.mxu0 0.0
    %972 = vmatprep.subr.mxu0 0.0
    %973 = vmatpush2.xpose.msra.mxu0 0.0
    %974 = vmatprep.subr.mxu0 0.0
    %975 = vmatpush2.xpose.msra.mxu0 0.0
    %976 = vmatprep.mubr.f32.mxu0 0.0
    %977 = vmatmul.mubr.f32.gmra.mxu0 %v908
    %v978 = vpop.f32.mrf.mxu0
    %v979 = vadd.f32 0.0, %v978
    %v980 = vpop.f32.mrf.mxu0
    %981 = vdwg.mxu0
    %v982 = vsel %vm83, %v901, -inf
    %983 = vmax.xlane.f32.xlu0 %v982
    %v984 = vpop.xlane.xlu0 %983
    %v985 = vsel %vm83, %v979, -inf
    %986 = vmax.xlane.f32.xlu0 %v985
    %v987 = vpop.xlane.xlu0 %986
    %v988 = vsub.f32 %v901, %v984
    %v989 = vsub.f32 %v979, %v987
    %v990 = vmul.f32 %v988, 1.442695
    %v991 = vpow.pop %v990
    %v992 = vmul.f32 %v989, 1.442695
    %v993 = vpow.pop %v992
    %v994 = vsel %vm83, %v991, 0.0
    %995 = vadd.xlane.f32.xlu0 %v994
    %v996 = vpop.xlane.xlu0 %995
    %v997 = vsel %vm83, %v993, 0.0
    %998 = vadd.xlane.f32.xlu0 %v997
    %v999 = vpop.xlane.xlu0 %998
    %v1000 = vrcp.pop %v996
    %v1001 = vrcp.pop %v999
    %v1002 = vmul.f32 %v991, %v1000
    %v1003 = vmul.f32 %v993, %v1001
    %1004 = vrot.lane.b32.xlu0 %v488, 56
    %v1005 = vpop.permute.xlu0 %1004
    %v1008 = vsel %vm83, %v1002, 0
    %1010 = vmatprep.subr.mxu0 0.0
    %1011 = vmatpush1.msra.mxu0 0.0
    %1012 = vmatprep.subr.mxu0 0.0
    %1013 = vmatpush1.msra.mxu0 0.0
    %1014 = vmatprep.subr.mxu0 0.0
    %1015 = vmatpush1.msra.mxu0 0.0
    %1016 = vmatprep.subr.mxu0 0.0
    %1017 = vmatpush1.msra.mxu0 0.0
    %1018 = vmatprep.subr.mxu0 0.0
    %1019 = vmatpush1.msra.mxu0 0.0
    %1020 = vmatprep.subr.mxu0 0.0
    %1021 = vmatpush1.msra.mxu0 0.0
    %1022 = vmatprep.subr.mxu0 0.0
    %1023 = vmatpush1.msra.mxu0 0.0
    %1024 = vmatprep.subr.mxu0 0.0
    %1025 = vmatpush1.msra.mxu0 0.0
    %1026 = vmatprep.subr.mxu0 0.0
    %1027 = vmatpush1.msra.mxu0 0.0
    %1028 = vmatprep.subr.mxu0 0.0
    %1029 = vmatpush1.msra.mxu0 0.0
    %1030 = vmatprep.subr.mxu0 0.0
    %1031 = vmatpush1.msra.mxu0 0.0
    %1032 = vmatprep.subr.mxu0 0.0
    %1033 = vmatpush1.msra.mxu0 0.0
    %1034 = vmatprep.subr.mxu0 0.0
    %1035 = vmatpush1.msra.mxu0 0.0
    %1036 = vmatprep.subr.mxu0 0.0
    %1037 = vmatpush1.msra.mxu0 0.0
    %1038 = vmatprep.subr.mxu0 0.0
    %1039 = vmatpush1.msra.mxu0 0.0
    %1040 = vmatprep.subr.mxu0 0.0
    %1041 = vmatpush1.msra.mxu0 %v1005
    %1042 = vmatprep.subr.mxu0 0.0
    %1043 = vmatpush2.msra.mxu0 0.0
    %1044 = vmatprep.subr.mxu0 0.0
    %1045 = vmatpush2.msra.mxu0 0.0
    %1046 = vmatprep.subr.mxu0 0.0
    %1047 = vmatpush2.msra.mxu0 0.0
    %1048 = vmatprep.subr.mxu0 0.0
    %1049 = vmatpush2.msra.mxu0 0.0
    %1050 = vmatprep.subr.mxu0 0.0
    %1051 = vmatpush2.msra.mxu0 0.0
    %1052 = vmatprep.subr.mxu0 0.0
    %1053 = vmatpush2.msra.mxu0 0.0
    %1054 = vmatprep.subr.mxu0 0.0
    %1055 = vmatpush2.msra.mxu0 0.0
    %1056 = vmatprep.subr.mxu0 0.0
    %1057 = vmatpush2.msra.mxu0 0.0
    %1058 = vmatprep.subr.mxu0 0.0
    %1059 = vmatpush2.msra.mxu0 0.0
    %1060 = vmatprep.subr.mxu0 0.0
    %1061 = vmatpush2.msra.mxu0 0.0
    %1062 = vmatprep.subr.mxu0 0.0
    %1063 = vmatpush2.msra.mxu0 0.0
    %1064 = vmatprep.subr.mxu0 0.0
    %1065 = vmatpush2.msra.mxu0 0.0
    %1066 = vmatprep.subr.mxu0 0.0
    %1067 = vmatpush2.msra.mxu0 0.0
    %1068 = vmatprep.subr.mxu0 0.0
    %1069 = vmatpush2.msra.mxu0 0.0
    %1070 = vmatprep.subr.mxu0 0.0
    %1071 = vmatpush2.msra.mxu0 0.0
    %1072 = vmatprep.subr.mxu0 0.0
    %1073 = vmatpush2.msra.mxu0 0.0
    %1074 = vmatprep.mubr.f32.mxu0 0.0
    %1075 = vmatmul.mubr.f32.gmra.mxu0 %v1008
    %v1076 = vpop.f32.mrf.mxu0
    %v1077 = vadd.f32 0.0, %v1076
    %v1078 = vpop.f32.mrf.mxu0
    %1079 = vdwg.mxu0
    %1080 = vrot.lane.b32.xlu0 %v493, 56
    %v1081 = vpop.permute.xlu0 %1080
    %v1084 = vsel %vm83, %v1003, 0
    %1086 = vmatprep.subr.mxu0 0.0
    %1087 = vmatpush1.msra.mxu0 0.0
    %1088 = vmatprep.subr.mxu0 0.0
    %1089 = vmatpush1.msra.mxu0 0.0
    %1090 = vmatprep.subr.mxu0 0.0
    %1091 = vmatpush1.msra.mxu0 0.0
    %1092 = vmatprep.subr.mxu0 0.0
    %1093 = vmatpush1.msra.mxu0 0.0
    %1094 = vmatprep.subr.mxu0 0.0
    %1095 = vmatpush1.msra.mxu0 0.0
    %1096 = vmatprep.subr.mxu0 0.0
    %1097 = vmatpush1.msra.mxu0 0.0
    %1098 = vmatprep.subr.mxu0 0.0
    %1099 = vmatpush1.msra.mxu0 0.0
    %1100 = vmatprep.subr.mxu0 0.0
    %1101 = vmatpush1.msra.mxu0 0.0
    %1102 = vmatprep.subr.mxu0 0.0
    %1103 = vmatpush1.msra.mxu0 0.0
    %1104 = vmatprep.subr.mxu0 0.0
    %1105 = vmatpush1.msra.mxu0 0.0
    %1106 = vmatprep.subr.mxu0 0.0
    %1107 = vmatpush1.msra.mxu0 0.0
    %1108 = vmatprep.subr.mxu0 0.0
    %1109 = vmatpush1.msra.mxu0 0.0
    %1110 = vmatprep.subr.mxu0 0.0
    %1111 = vmatpush1.msra.mxu0 0.0
    %1112 = vmatprep.subr.mxu0 0.0
    %1113 = vmatpush1.msra.mxu0 0.0
    %1114 = vmatprep.subr.mxu0 0.0
    %1115 = vmatpush1.msra.mxu0 0.0
    %1116 = vmatprep.subr.mxu0 0.0
    %1117 = vmatpush1.msra.mxu0 %v1081
    %1118 = vmatprep.subr.mxu0 0.0
    %1119 = vmatpush2.msra.mxu0 0.0
    %1120 = vmatprep.subr.mxu0 0.0
    %1121 = vmatpush2.msra.mxu0 0.0
    %1122 = vmatprep.subr.mxu0 0.0
    %1123 = vmatpush2.msra.mxu0 0.0
    %1124 = vmatprep.subr.mxu0 0.0
    %1125 = vmatpush2.msra.mxu0 0.0
    %1126 = vmatprep.subr.mxu0 0.0
    %1127 = vmatpush2.msra.mxu0 0.0
    %1128 = vmatprep.subr.mxu0 0.0
    %1129 = vmatpush2.msra.mxu0 0.0
    %1130 = vmatprep.subr.mxu0 0.0
    %1131 = vmatpush2.msra.mxu0 0.0
    %1132 = vmatprep.subr.mxu0 0.0
    %1133 = vmatpush2.msra.mxu0 0.0
    %1134 = vmatprep.subr.mxu0 0.0
    %1135 = vmatpush2.msra.mxu0 0.0
    %1136 = vmatprep.subr.mxu0 0.0
    %1137 = vmatpush2.msra.mxu0 0.0
    %1138 = vmatprep.subr.mxu0 0.0
    %1139 = vmatpush2.msra.mxu0 0.0
    %1140 = vmatprep.subr.mxu0 0.0
    %1141 = vmatpush2.msra.mxu0 0.0
    %1142 = vmatprep.subr.mxu0 0.0
    %1143 = vmatpush2.msra.mxu0 0.0
    %1144 = vmatprep.subr.mxu0 0.0
    %1145 = vmatpush2.msra.mxu0 0.0
    %1146 = vmatprep.subr.mxu0 0.0
    %1147 = vmatpush2.msra.mxu0 0.0
    %1148 = vmatprep.subr.mxu0 0.0
    %1149 = vmatpush2.msra.mxu0 0.0
    %1150 = vmatprep.mubr.f32.mxu0 0.0
    %1151 = vmatmul.mubr.f32.gmra.mxu0 %v1084
    %v1152 = vpop.f32.mrf.mxu0
    %v1153 = vadd.f32 0.0, %v1152
    %v1154 = vpop.f32.mrf.mxu0
    %1155 = vdwg.mxu0
    %1158 = vrot.lane.b32.xlu0 %v1077, 8
    %v1159 = vpop.permute.xlu0 %1158
    %1160 = vrot.lane.b32.xlu0 %v1153, 8
    %v1161 = vpop.permute.xlu0 %1160
    %vm1164 = vcmask 130112
    %1165 = vst.msk [vmem:[#allocation2] sm:$0xff] %vm1164, %v1159
    %1166 = vst.msk [vmem:[#allocation2 + $0x8] sm:$0xff] %vm1164, %v1161
    %1167 = vrot.lane.b32.xlu0 %v488, 112
    %v1168 = vpop.permute.xlu0 %1167
    %1169 = vrot.lane.b32.xlu0 %v488, 80
    %v1170 = vpop.permute.xlu0 %1169
    %v1171 = vsel %vm83, %v1168, 0
    %v1173 = vsel %vm83, %v1170, 0
    %1175 = vmatprep.subr.mxu0 0.0
    %1176 = vmatpush1.xpose.msra.mxu0 0.0
    %1177 = vmatprep.subr.mxu0 0.0
    %1178 = vmatpush1.xpose.msra.mxu0 0.0
    %1179 = vmatprep.subr.mxu0 0.0
    %1180 = vmatpush1.xpose.msra.mxu0 0.0
    %1181 = vmatprep.subr.mxu0 0.0
    %1182 = vmatpush1.xpose.msra.mxu0 0.0
    %1183 = vmatprep.subr.mxu0 0.0
    %1184 = vmatpush1.xpose.msra.mxu0 0.0
    %1185 = vmatprep.subr.mxu0 0.0
    %1186 = vmatpush1.xpose.msra.mxu0 0.0
    %1187 = vmatprep.subr.mxu0 0.0
    %1188 = vmatpush1.xpose.msra.mxu0 0.0
    %1189 = vmatprep.subr.mxu0 0.0
    %1190 = vmatpush1.xpose.msra.mxu0 0.0
    %1191 = vmatprep.subr.mxu0 0.0
    %1192 = vmatpush1.xpose.msra.mxu0 0.0
    %1193 = vmatprep.subr.mxu0 0.0
    %1194 = vmatpush1.xpose.msra.mxu0 0.0
    %1195 = vmatprep.subr.mxu0 0.0
    %1196 = vmatpush1.xpose.msra.mxu0 0.0
    %1197 = vmatprep.subr.mxu0 0.0
    %1198 = vmatpush1.xpose.msra.mxu0 0.0
    %1199 = vmatprep.subr.mxu0 0.0
    %1200 = vmatpush1.xpose.msra.mxu0 0.0
    %1201 = vmatprep.subr.mxu0 0.0
    %1202 = vmatpush1.xpose.msra.mxu0 0.0
    %1203 = vmatprep.subr.mxu0 0.0
    %1204 = vmatpush1.xpose.msra.mxu0 0.0
    %1205 = vmatprep.subr.mxu0 0.0
    %1206 = vmatpush1.xpose.msra.mxu0 %v1173
    %1207 = vmatprep.subr.mxu0 0.0
    %1208 = vmatpush2.xpose.msra.mxu0 0.0
    %1209 = vmatprep.subr.mxu0 0.0
    %1210 = vmatpush2.xpose.msra.mxu0 0.0
    %1211 = vmatprep.subr.mxu0 0.0
    %1212 = vmatpush2.xpose.msra.mxu0 0.0
    %1213 = vmatprep.subr.mxu0 0.0
    %1214 = vmatpush2.xpose.msra.mxu0 0.0
    %1215 = vmatprep.subr.mxu0 0.0
    %1216 = vmatpush2.xpose.msra.mxu0 0.0
    %1217 = vmatprep.subr.mxu0 0.0
    %1218 = vmatpush2.xpose.msra.mxu0 0.0
    %1219 = vmatprep.subr.mxu0 0.0
    %1220 = vmatpush2.xpose.msra.mxu0 0.0
    %1221 = vmatprep.subr.mxu0 0.0
    %1222 = vmatpush2.xpose.msra.mxu0 0.0
    %1223 = vmatprep.subr.mxu0 0.0
    %1224 = vmatpush2.xpose.msra.mxu0 0.0
    %1225 = vmatprep.subr.mxu0 0.0
    %1226 = vmatpush2.xpose.msra.mxu0 0.0
    %1227 = vmatprep.subr.mxu0 0.0
    %1228 = vmatpush2.xpose.msra.mxu0 0.0
    %1229 = vmatprep.subr.mxu0 0.0
    %1230 = vmatpush2.xpose.msra.mxu0 0.0
    %1231 = vmatprep.subr.mxu0 0.0
    %1232 = vmatpush2.xpose.msra.mxu0 0.0
    %1233 = vmatprep.subr.mxu0 0.0
    %1234 = vmatpush2.xpose.msra.mxu0 0.0
    %1235 = vmatprep.subr.mxu0 0.0
    %1236 = vmatpush2.xpose.msra.mxu0 0.0
    %1237 = vmatprep.subr.mxu0 0.0
    %1238 = vmatpush2.xpose.msra.mxu0 0.0
    %1239 = vmatprep.mubr.f32.mxu0 0.0
    %1240 = vmatmul.mubr.f32.gmra.mxu0 %v1171
    %v1241 = vpop.f32.mrf.mxu0
    %v1242 = vadd.f32 0.0, %v1241
    %v1243 = vpop.f32.mrf.mxu0
    %1244 = vdwg.mxu0
    %1245 = vrot.lane.b32.xlu0 %v493, 112
    %v1246 = vpop.permute.xlu0 %1245
    %1247 = vrot.lane.b32.xlu0 %v493, 80
    %v1248 = vpop.permute.xlu0 %1247
    %v1249 = vsel %vm83, %v1246, 0
    %v1251 = vsel %vm83, %v1248, 0
    %1253 = vmatprep.subr.mxu0 0.0
    %1254 = vmatpush1.xpose.msra.mxu0 0.0
    %1255 = vmatprep.subr.mxu0 0.0
    %1256 = vmatpush1.xpose.msra.mxu0 0.0
    %1257 = vmatprep.subr.mxu0 0.0
    %1258 = vmatpush1.xpose.msra.mxu0 0.0
    %1259 = vmatprep.subr.mxu0 0.0
    %1260 = vmatpush1.xpose.msra.mxu0 0.0
    %1261 = vmatprep.subr.mxu0 0.0
    %1262 = vmatpush1.xpose.msra.mxu0 0.0
    %1263 = vmatprep.subr.mxu0 0.0
    %1264 = vmatpush1.xpose.msra.mxu0 0.0
    %1265 = vmatprep.subr.mxu0 0.0
    %1266 = vmatpush1.xpose.msra.mxu0 0.0
    %1267 = vmatprep.subr.mxu0 0.0
    %1268 = vmatpush1.xpose.msra.mxu0 0.0
    %1269 = vmatprep.subr.mxu0 0.0
    %1270 = vmatpush1.xpose.msra.mxu0 0.0
    %1271 = vmatprep.subr.mxu0 0.0
    %1272 = vmatpush1.xpose.msra.mxu0 0.0
    %1273 = vmatprep.subr.mxu0 0.0
    %1274 = vmatpush1.xpose.msra.mxu0 0.0
    %1275 = vmatprep.subr.mxu0 0.0
    %1276 = vmatpush1.xpose.msra.mxu0 0.0
    %1277 = vmatprep.subr.mxu0 0.0
    %1278 = vmatpush1.xpose.msra.mxu0 0.0
    %1279 = vmatprep.subr.mxu0 0.0
    %1280 = vmatpush1.xpose.msra.mxu0 0.0
    %1281 = vmatprep.subr.mxu0 0.0
    %1282 = vmatpush1.xpose.msra.mxu0 0.0
    %1283 = vmatprep.subr.mxu0 0.0
    %1284 = vmatpush1.xpose.msra.mxu0 %v1251
    %1285 = vmatprep.subr.mxu0 0.0
    %1286 = vmatpush2.xpose.msra.mxu0 0.0
    %1287 = vmatprep.subr.mxu0 0.0
    %1288 = vmatpush2.xpose.msra.mxu0 0.0
    %1289 = vmatprep.subr.mxu0 0.0
    %1290 = vmatpush2.xpose.msra.mxu0 0.0
    %1291 = vmatprep.subr.mxu0 0.0
    %1292 = vmatpush2.xpose.msra.mxu0 0.0
    %1293 = vmatprep.subr.mxu0 0.0
    %1294 = vmatpush2.xpose.msra.mxu0 0.0
    %1295 = vmatprep.subr.mxu0 0.0
    %1296 = vmatpush2.xpose.msra.mxu0 0.0
    %1297 = vmatprep.subr.mxu0 0.0
    %1298 = vmatpush2.xpose.msra.mxu0 0.0
    %1299 = vmatprep.subr.mxu0 0.0
    %1300 = vmatpush2.xpose.msra.mxu0 0.0
    %1301 = vmatprep.subr.mxu0 0.0
    %1302 = vmatpush2.xpose.msra.mxu0 0.0
    %1303 = vmatprep.subr.mxu0 0.0
    %1304 = vmatpush2.xpose.msra.mxu0 0.0
    %1305 = vmatprep.subr.mxu0 0.0
    %1306 = vmatpush2.xpose.msra.mxu0 0.0
    %1307 = vmatprep.subr.mxu0 0.0
    %1308 = vmatpush2.xpose.msra.mxu0 0.0
    %1309 = vmatprep.subr.mxu0 0.0
    %1310 = vmatpush2.xpose.msra.mxu0 0.0
    %1311 = vmatprep.subr.mxu0 0.0
    %1312 = vmatpush2.xpose.msra.mxu0 0.0
    %1313 = vmatprep.subr.mxu0 0.0
    %1314 = vmatpush2.xpose.msra.mxu0 0.0
    %1315 = vmatprep.subr.mxu0 0.0
    %1316 = vmatpush2.xpose.msra.mxu0 0.0
    %1317 = vmatprep.mubr.f32.mxu0 0.0
    %1318 = vmatmul.mubr.f32.gmra.mxu0 %v1249
    %v1319 = vpop.f32.mrf.mxu0
    %v1320 = vadd.f32 0.0, %v1319
    %v1321 = vpop.f32.mrf.mxu0
    %1322 = vdwg.mxu0
    %v1323 = vsel %vm83, %v1242, -inf
    %1324 = vmax.xlane.f32.xlu0 %v1323
    %v1325 = vpop.xlane.xlu0 %1324
    %v1326 = vsel %vm83, %v1320, -inf
    %1327 = vmax.xlane.f32.xlu0 %v1326
    %v1328 = vpop.xlane.xlu0 %1327
    %v1329 = vsub.f32 %v1242, %v1325
    %v1330 = vsub.f32 %v1320, %v1328
    %v1331 = vmul.f32 %v1329, 1.442695
    %v1332 = vpow.pop %v1331
    %v1333 = vmul.f32 %v1330, 1.442695
    %v1334 = vpow.pop %v1333
    %v1335 = vsel %vm83, %v1332, 0.0
    %1336 = vadd.xlane.f32.xlu0 %v1335
    %v1337 = vpop.xlane.xlu0 %1336
    %v1338 = vsel %vm83, %v1334, 0.0
    %1339 = vadd.xlane.f32.xlu0 %v1338
    %v1340 = vpop.xlane.xlu0 %1339
    %v1341 = vrcp.pop %v1337
    %v1342 = vrcp.pop %v1340
    %v1343 = vmul.f32 %v1332, %v1341
    %v1344 = vmul.f32 %v1334, %v1342
    %1345 = vrot.lane.b32.xlu0 %v488, 48
    %v1346 = vpop.permute.xlu0 %1345
    %v1349 = vsel %vm83, %v1343, 0
    %1351 = vmatprep.subr.mxu0 0.0
    %1352 = vmatpush1.msra.mxu0 0.0
    %1353 = vmatprep.subr.mxu0 0.0
    %1354 = vmatpush1.msra.mxu0 0.0
    %1355 = vmatprep.subr.mxu0 0.0
    %1356 = vmatpush1.msra.mxu0 0.0
    %1357 = vmatprep.subr.mxu0 0.0
    %1358 = vmatpush1.msra.mxu0 0.0
    %1359 = vmatprep.subr.mxu0 0.0
    %1360 = vmatpush1.msra.mxu0 0.0
    %1361 = vmatprep.subr.mxu0 0.0
    %1362 = vmatpush1.msra.mxu0 0.0
    %1363 = vmatprep.subr.mxu0 0.0
    %1364 = vmatpush1.msra.mxu0 0.0
    %1365 = vmatprep.subr.mxu0 0.0
    %1366 = vmatpush1.msra.mxu0 0.0
    %1367 = vmatprep.subr.mxu0 0.0
    %1368 = vmatpush1.msra.mxu0 0.0
    %1369 = vmatprep.subr.mxu0 0.0
    %1370 = vmatpush1.msra.mxu0 0.0
    %1371 = vmatprep.subr.mxu0 0.0
    %1372 = vmatpush1.msra.mxu0 0.0
    %1373 = vmatprep.subr.mxu0 0.0
    %1374 = vmatpush1.msra.mxu0 0.0
    %1375 = vmatprep.subr.mxu0 0.0
    %1376 = vmatpush1.msra.mxu0 0.0
    %1377 = vmatprep.subr.mxu0 0.0
    %1378 = vmatpush1.msra.mxu0 0.0
    %1379 = vmatprep.subr.mxu0 0.0
    %1380 = vmatpush1.msra.mxu0 0.0
    %1381 = vmatprep.subr.mxu0 0.0
    %1382 = vmatpush1.msra.mxu0 %v1346
    %1383 = vmatprep.subr.mxu0 0.0
    %1384 = vmatpush2.msra.mxu0 0.0
    %1385 = vmatprep.subr.mxu0 0.0
    %1386 = vmatpush2.msra.mxu0 0.0
    %1387 = vmatprep.subr.mxu0 0.0
    %1388 = vmatpush2.msra.mxu0 0.0
    %1389 = vmatprep.subr.mxu0 0.0
    %1390 = vmatpush2.msra.mxu0 0.0
    %1391 = vmatprep.subr.mxu0 0.0
    %1392 = vmatpush2.msra.mxu0 0.0
    %1393 = vmatprep.subr.mxu0 0.0
    %1394 = vmatpush2.msra.mxu0 0.0
    %1395 = vmatprep.subr.mxu0 0.0
    %1396 = vmatpush2.msra.mxu0 0.0
    %1397 = vmatprep.subr.mxu0 0.0
    %1398 = vmatpush2.msra.mxu0 0.0
    %1399 = vmatprep.subr.mxu0 0.0
    %1400 = vmatpush2.msra.mxu0 0.0
    %1401 = vmatprep.subr.mxu0 0.0
    %1402 = vmatpush2.msra.mxu0 0.0
    %1403 = vmatprep.subr.mxu0 0.0
    %1404 = vmatpush2.msra.mxu0 0.0
    %1405 = vmatprep.subr.mxu0 0.0
    %1406 = vmatpush2.msra.mxu0 0.0
    %1407 = vmatprep.subr.mxu0 0.0
    %1408 = vmatpush2.msra.mxu0 0.0
    %1409 = vmatprep.subr.mxu0 0.0
    %1410 = vmatpush2.msra.mxu0 0.0
    %1411 = vmatprep.subr.mxu0 0.0
    %1412 = vmatpush2.msra.mxu0 0.0
    %1413 = vmatprep.subr.mxu0 0.0
    %1414 = vmatpush2.msra.mxu0 0.0
    %1415 = vmatprep.mubr.f32.mxu0 0.0
    %1416 = vmatmul.mubr.f32.gmra.mxu0 %v1349
    %v1417 = vpop.f32.mrf.mxu0
    %v1418 = vadd.f32 0.0, %v1417
    %v1419 = vpop.f32.mrf.mxu0
    %1420 = vdwg.mxu0
    %1421 = vrot.lane.b32.xlu0 %v493, 48
    %v1422 = vpop.permute.xlu0 %1421
    %v1425 = vsel %vm83, %v1344, 0
    %1427 = vmatprep.subr.mxu0 0.0
    %1428 = vmatpush1.msra.mxu0 0.0
    %1429 = vmatprep.subr.mxu0 0.0
    %1430 = vmatpush1.msra.mxu0 0.0
    %1431 = vmatprep.subr.mxu0 0.0
    %1432 = vmatpush1.msra.mxu0 0.0
    %1433 = vmatprep.subr.mxu0 0.0
    %1434 = vmatpush1.msra.mxu0 0.0
    %1435 = vmatprep.subr.mxu0 0.0
    %1436 = vmatpush1.msra.mxu0 0.0
    %1437 = vmatprep.subr.mxu0 0.0
    %1438 = vmatpush1.msra.mxu0 0.0
    %1439 = vmatprep.subr.mxu0 0.0
    %1440 = vmatpush1.msra.mxu0 0.0
    %1441 = vmatprep.subr.mxu0 0.0
    %1442 = vmatpush1.msra.mxu0 0.0
    %1443 = vmatprep.subr.mxu0 0.0
    %1444 = vmatpush1.msra.mxu0 0.0
    %1445 = vmatprep.subr.mxu0 0.0
    %1446 = vmatpush1.msra.mxu0 0.0
    %1447 = vmatprep.subr.mxu0 0.0
    %1448 = vmatpush1.msra.mxu0 0.0
    %1449 = vmatprep.subr.mxu0 0.0
    %1450 = vmatpush1.msra.mxu0 0.0
    %1451 = vmatprep.subr.mxu0 0.0
    %1452 = vmatpush1.msra.mxu0 0.0
    %1453 = vmatprep.subr.mxu0 0.0
    %1454 = vmatpush1.msra.mxu0 0.0
    %1455 = vmatprep.subr.mxu0 0.0
    %1456 = vmatpush1.msra.mxu0 0.0
    %1457 = vmatprep.subr.mxu0 0.0
    %1458 = vmatpush1.msra.mxu0 %v1422
    %1459 = vmatprep.subr.mxu0 0.0
    %1460 = vmatpush2.msra.mxu0 0.0
    %1461 = vmatprep.subr.mxu0 0.0
    %1462 = vmatpush2.msra.mxu0 0.0
    %1463 = vmatprep.subr.mxu0 0.0
    %1464 = vmatpush2.msra.mxu0 0.0
    %1465 = vmatprep.subr.mxu0 0.0
    %1466 = vmatpush2.msra.mxu0 0.0
    %1467 = vmatprep.subr.mxu0 0.0
    %1468 = vmatpush2.msra.mxu0 0.0
    %1469 = vmatprep.subr.mxu0 0.0
    %1470 = vmatpush2.msra.mxu0 0.0
    %1471 = vmatprep.subr.mxu0 0.0
    %1472 = vmatpush2.msra.mxu0 0.0
    %1473 = vmatprep.subr.mxu0 0.0
    %1474 = vmatpush2.msra.mxu0 0.0
    %1475 = vmatprep.subr.mxu0 0.0
    %1476 = vmatpush2.msra.mxu0 0.0
    %1477 = vmatprep.subr.mxu0 0.0
    %1478 = vmatpush2.msra.mxu0 0.0
    %1479 = vmatprep.subr.mxu0 0.0
    %1480 = vmatpush2.msra.mxu0 0.0
    %1481 = vmatprep.subr.mxu0 0.0
    %1482 = vmatpush2.msra.mxu0 0.0
    %1483 = vmatprep.subr.mxu0 0.0
    %1484 = vmatpush2.msra.mxu0 0.0
    %1485 = vmatprep.subr.mxu0 0.0
    %1486 = vmatpush2.msra.mxu0 0.0
    %1487 = vmatprep.subr.mxu0 0.0
    %1488 = vmatpush2.msra.mxu0 0.0
    %1489 = vmatprep.subr.mxu0 0.0
    %1490 = vmatpush2.msra.mxu0 0.0
    %1491 = vmatprep.mubr.f32.mxu0 0.0
    %1492 = vmatmul.mubr.f32.gmra.mxu0 %v1425
    %v1493 = vpop.f32.mrf.mxu0
    %v1494 = vadd.f32 0.0, %v1493
    %v1495 = vpop.f32.mrf.mxu0
    %1496 = vdwg.mxu0
    %1499 = vrot.lane.b32.xlu0 %v1418, 16
    %v1500 = vpop.permute.xlu0 %1499
    %1501 = vrot.lane.b32.xlu0 %v1494, 16
    %v1502 = vpop.permute.xlu0 %1501
    %vm1505 = vcmask 195712
    %1506 = vst.msk [vmem:[#allocation2] sm:$0xff] %vm1505, %v1500
    %1507 = vst.msk [vmem:[#allocation2 + $0x8] sm:$0xff] %vm1505, %v1502
    %1508 = vrot.lane.b32.xlu0 %v488, 104
    %v1509 = vpop.permute.xlu0 %1508
    %1510 = vrot.lane.b32.xlu0 %v488, 72
    %v1511 = vpop.permute.xlu0 %1510
    %v1512 = vsel %vm83, %v1509, 0
    %v1514 = vsel %vm83, %v1511, 0
    %1516 = vmatprep.subr.mxu0 0.0
    %1517 = vmatpush1.xpose.msra.mxu0 0.0
    %1518 = vmatprep.subr.mxu0 0.0
    %1519 = vmatpush1.xpose.msra.mxu0 0.0
    %1520 = vmatprep.subr.mxu0 0.0
    %1521 = vmatpush1.xpose.msra.mxu0 0.0
    %1522 = vmatprep.subr.mxu0 0.0
    %1523 = vmatpush1.xpose.msra.mxu0 0.0
    %1524 = vmatprep.subr.mxu0 0.0
    %1525 = vmatpush1.xpose.msra.mxu0 0.0
    %1526 = vmatprep.subr.mxu0 0.0
    %1527 = vmatpush1.xpose.msra.mxu0 0.0
    %1528 = vmatprep.subr.mxu0 0.0
    %1529 = vmatpush1.xpose.msra.mxu0 0.0
    %1530 = vmatprep.subr.mxu0 0.0
    %1531 = vmatpush1.xpose.msra.mxu0 0.0
    %1532 = vmatprep.subr.mxu0 0.0
    %1533 = vmatpush1.xpose.msra.mxu0 0.0
    %1534 = vmatprep.subr.mxu0 0.0
    %1535 = vmatpush1.xpose.msra.mxu0 0.0
    %1536 = vmatprep.subr.mxu0 0.0
    %1537 = vmatpush1.xpose.msra.mxu0 0.0
    %1538 = vmatprep.subr.mxu0 0.0
    %1539 = vmatpush1.xpose.msra.mxu0 0.0
    %1540 = vmatprep.subr.mxu0 0.0
    %1541 = vmatpush1.xpose.msra.mxu0 0.0
    %1542 = vmatprep.subr.mxu0 0.0
    %1543 = vmatpush1.xpose.msra.mxu0 0.0
    %1544 = vmatprep.subr.mxu0 0.0
    %1545 = vmatpush1.xpose.msra.mxu0 0.0
    %1546 = vmatprep.subr.mxu0 0.0
    %1547 = vmatpush1.xpose.msra.mxu0 %v1514
    %1548 = vmatprep.subr.mxu0 0.0
    %1549 = vmatpush2.xpose.msra.mxu0 0.0
    %1550 = vmatprep.subr.mxu0 0.0
    %1551 = vmatpush2.xpose.msra.mxu0 0.0
    %1552 = vmatprep.subr.mxu0 0.0
    %1553 = vmatpush2.xpose.msra.mxu0 0.0
    %1554 = vmatprep.subr.mxu0 0.0
    %1555 = vmatpush2.xpose.msra.mxu0 0.0
    %1556 = vmatprep.subr.mxu0 0.0
    %1557 = vmatpush2.xpose.msra.mxu0 0.0
    %1558 = vmatprep.subr.mxu0 0.0
    %1559 = vmatpush2.xpose.msra.mxu0 0.0
    %1560 = vmatprep.subr.mxu0 0.0
    %1561 = vmatpush2.xpose.msra.mxu0 0.0
    %1562 = vmatprep.subr.mxu0 0.0
    %1563 = vmatpush2.xpose.msra.mxu0 0.0
    %1564 = vmatprep.subr.mxu0 0.0
    %1565 = vmatpush2.xpose.msra.mxu0 0.0
    %1566 = vmatprep.subr.mxu0 0.0
    %1567 = vmatpush2.xpose.msra.mxu0 0.0
    %1568 = vmatprep.subr.mxu0 0.0
    %1569 = vmatpush2.xpose.msra.mxu0 0.0
    %1570 = vmatprep.subr.mxu0 0.0
    %1571 = vmatpush2.xpose.msra.mxu0 0.0
    %1572 = vmatprep.subr.mxu0 0.0
    %1573 = vmatpush2.xpose.msra.mxu0 0.0
    %1574 = vmatprep.subr.mxu0 0.0
    %1575 = vmatpush2.xpose.msra.mxu0 0.0
    %1576 = vmatprep.subr.mxu0 0.0
    %1577 = vmatpush2.xpose.msra.mxu0 0.0
    %1578 = vmatprep.subr.mxu0 0.0
    %1579 = vmatpush2.xpose.msra.mxu0 0.0
    %1580 = vmatprep.mubr.f32.mxu0 0.0
    %1581 = vmatmul.mubr.f32.gmra.mxu0 %v1512
    %v1582 = vpop.f32.mrf.mxu0
    %v1583 = vadd.f32 0.0, %v1582
    %v1584 = vpop.f32.mrf.mxu0
    %1585 = vdwg.mxu0
    %1586 = vrot.lane.b32.xlu0 %v493, 104
    %v1587 = vpop.permute.xlu0 %1586
    %1588 = vrot.lane.b32.xlu0 %v493, 72
    %v1589 = vpop.permute.xlu0 %1588
    %v1590 = vsel %vm83, %v1587, 0
    %v1592 = vsel %vm83, %v1589, 0
    %1594 = vmatprep.subr.mxu0 0.0
    %1595 = vmatpush1.xpose.msra.mxu0 0.0
    %1596 = vmatprep.subr.mxu0 0.0
    %1597 = vmatpush1.xpose.msra.mxu0 0.0
    %1598 = vmatprep.subr.mxu0 0.0
    %1599 = vmatpush1.xpose.msra.mxu0 0.0
    %1600 = vmatprep.subr.mxu0 0.0
    %1601 = vmatpush1.xpose.msra.mxu0 0.0
    %1602 = vmatprep.subr.mxu0 0.0
    %1603 = vmatpush1.xpose.msra.mxu0 0.0
    %1604 = vmatprep.subr.mxu0 0.0
    %1605 = vmatpush1.xpose.msra.mxu0 0.0
    %1606 = vmatprep.subr.mxu0 0.0
    %1607 = vmatpush1.xpose.msra.mxu0 0.0
    %1608 = vmatprep.subr.mxu0 0.0
    %1609 = vmatpush1.xpose.msra.mxu0 0.0
    %1610 = vmatprep.subr.mxu0 0.0
    %1611 = vmatpush1.xpose.msra.mxu0 0.0
    %1612 = vmatprep.subr.mxu0 0.0
    %1613 = vmatpush1.xpose.msra.mxu0 0.0
    %1614 = vmatprep.subr.mxu0 0.0
    %1615 = vmatpush1.xpose.msra.mxu0 0.0
    %1616 = vmatprep.subr.mxu0 0.0
    %1617 = vmatpush1.xpose.msra.mxu0 0.0
    %1618 = vmatprep.subr.mxu0 0.0
    %1619 = vmatpush1.xpose.msra.mxu0 0.0
    %1620 = vmatprep.subr.mxu0 0.0
    %1621 = vmatpush1.xpose.msra.mxu0 0.0
    %1622 = vmatprep.subr.mxu0 0.0
    %1623 = vmatpush1.xpose.msra.mxu0 0.0
    %1624 = vmatprep.subr.mxu0 0.0
    %1625 = vmatpush1.xpose.msra.mxu0 %v1592
    %1626 = vmatprep.subr.mxu0 0.0
    %1627 = vmatpush2.xpose.msra.mxu0 0.0
    %1628 = vmatprep.subr.mxu0 0.0
    %1629 = vmatpush2.xpose.msra.mxu0 0.0
    %1630 = vmatprep.subr.mxu0 0.0
    %1631 = vmatpush2.xpose.msra.mxu0 0.0
    %1632 = vmatprep.subr.mxu0 0.0
    %1633 = vmatpush2.xpose.msra.mxu0 0.0
    %1634 = vmatprep.subr.mxu0 0.0
    %1635 = vmatpush2.xpose.msra.mxu0 0.0
    %1636 = vmatprep.subr.mxu0 0.0
    %1637 = vmatpush2.xpose.msra.mxu0 0.0
    %1638 = vmatprep.subr.mxu0 0.0
    %1639 = vmatpush2.xpose.msra.mxu0 0.0
    %1640 = vmatprep.subr.mxu0 0.0
    %1641 = vmatpush2.xpose.msra.mxu0 0.0
    %1642 = vmatprep.subr.mxu0 0.0
    %1643 = vmatpush2.xpose.msra.mxu0 0.0
    %1644 = vmatprep.subr.mxu0 0.0
    %1645 = vmatpush2.xpose.msra.mxu0 0.0
    %1646 = vmatprep.subr.mxu0 0.0
    %1647 = vmatpush2.xpose.msra.mxu0 0.0
    %1648 = vmatprep.subr.mxu0 0.0
    %1649 = vmatpush2.xpose.msra.mxu0 0.0
    %1650 = vmatprep.subr.mxu0 0.0
    %1651 = vmatpush2.xpose.msra.mxu0 0.0
    %1652 = vmatprep.subr.mxu0 0.0
    %1653 = vmatpush2.xpose.msra.mxu0 0.0
    %1654 = vmatprep.subr.mxu0 0.0
    %1655 = vmatpush2.xpose.msra.mxu0 0.0
    %1656 = vmatprep.subr.mxu0 0.0
    %1657 = vmatpush2.xpose.msra.mxu0 0.0
    %1658 = vmatprep.mubr.f32.mxu0 0.0
    %1659 = vmatmul.mubr.f32.gmra.mxu0 %v1590
    %v1660 = vpop.f32.mrf.mxu0
    %v1661 = vadd.f32 0.0, %v1660
    %v1662 = vpop.f32.mrf.mxu0
    %1663 = vdwg.mxu0
    %v1664 = vsel %vm83, %v1583, -inf
    %1665 = vmax.xlane.f32.xlu0 %v1664
    %v1666 = vpop.xlane.xlu0 %1665
    %v1667 = vsel %vm83, %v1661, -inf
    %1668 = vmax.xlane.f32.xlu0 %v1667
    %v1669 = vpop.xlane.xlu0 %1668
    %v1670 = vsub.f32 %v1583, %v1666
    %v1671 = vsub.f32 %v1661, %v1669
    %v1672 = vmul.f32 %v1670, 1.442695
    %v1673 = vpow.pop %v1672
    %v1674 = vmul.f32 %v1671, 1.442695
    %v1675 = vpow.pop %v1674
    %v1676 = vsel %vm83, %v1673, 0.0
    %1677 = vadd.xlane.f32.xlu0 %v1676
    %v1678 = vpop.xlane.xlu0 %1677
    %v1679 = vsel %vm83, %v1675, 0.0
    %1680 = vadd.xlane.f32.xlu0 %v1679
    %v1681 = vpop.xlane.xlu0 %1680
    %v1682 = vrcp.pop %v1678
    %v1683 = vrcp.pop %v1681
    %v1684 = vmul.f32 %v1673, %v1682
    %v1685 = vmul.f32 %v1675, %v1683
    %1686 = vrot.lane.b32.xlu0 %v488, 40
    %v1687 = vpop.permute.xlu0 %1686
    %v1690 = vsel %vm83, %v1684, 0
    %1692 = vmatprep.subr.mxu0 0.0
    %1693 = vmatpush1.msra.mxu0 0.0
    %1694 = vmatprep.subr.mxu0 0.0
    %1695 = vmatpush1.msra.mxu0 0.0
    %1696 = vmatprep.subr.mxu0 0.0
    %1697 = vmatpush1.msra.mxu0 0.0
    %1698 = vmatprep.subr.mxu0 0.0
    %1699 = vmatpush1.msra.mxu0 0.0
    %1700 = vmatprep.subr.mxu0 0.0
    %1701 = vmatpush1.msra.mxu0 0.0
    %1702 = vmatprep.subr.mxu0 0.0
    %1703 = vmatpush1.msra.mxu0 0.0
    %1704 = vmatprep.subr.mxu0 0.0
    %1705 = vmatpush1.msra.mxu0 0.0
    %1706 = vmatprep.subr.mxu0 0.0
    %1707 = vmatpush1.msra.mxu0 0.0
    %1708 = vmatprep.subr.mxu0 0.0
    %1709 = vmatpush1.msra.mxu0 0.0
    %1710 = vmatprep.subr.mxu0 0.0
    %1711 = vmatpush1.msra.mxu0 0.0
    %1712 = vmatprep.subr.mxu0 0.0
    %1713 = vmatpush1.msra.mxu0 0.0
    %1714 = vmatprep.subr.mxu0 0.0
    %1715 = vmatpush1.msra.mxu0 0.0
    %1716 = vmatprep.subr.mxu0 0.0
    %1717 = vmatpush1.msra.mxu0 0.0
    %1718 = vmatprep.subr.mxu0 0.0
    %1719 = vmatpush1.msra.mxu0 0.0
    %1720 = vmatprep.subr.mxu0 0.0
    %1721 = vmatpush1.msra.mxu0 0.0
    %1722 = vmatprep.subr.mxu0 0.0
    %1723 = vmatpush1.msra.mxu0 %v1687
    %1724 = vmatprep.subr.mxu0 0.0
    %1725 = vmatpush2.msra.mxu0 0.0
    %1726 = vmatprep.subr.mxu0 0.0
    %1727 = vmatpush2.msra.mxu0 0.0
    %1728 = vmatprep.subr.mxu0 0.0
    %1729 = vmatpush2.msra.mxu0 0.0
    %1730 = vmatprep.subr.mxu0 0.0
    %1731 = vmatpush2.msra.mxu0 0.0
    %1732 = vmatprep.subr.mxu0 0.0
    %1733 = vmatpush2.msra.mxu0 0.0
    %1734 = vmatprep.subr.mxu0 0.0
    %1735 = vmatpush2.msra.mxu0 0.0
    %1736 = vmatprep.subr.mxu0 0.0
    %1737 = vmatpush2.msra.mxu0 0.0
    %1738 = vmatprep.subr.mxu0 0.0
    %1739 = vmatpush2.msra.mxu0 0.0
    %1740 = vmatprep.subr.mxu0 0.0
    %1741 = vmatpush2.msra.mxu0 0.0
    %1742 = vmatprep.subr.mxu0 0.0
    %1743 = vmatpush2.msra.mxu0 0.0
    %1744 = vmatprep.subr.mxu0 0.0
    %1745 = vmatpush2.msra.mxu0 0.0
    %1746 = vmatprep.subr.mxu0 0.0
    %1747 = vmatpush2.msra.mxu0 0.0
    %1748 = vmatprep.subr.mxu0 0.0
    %1749 = vmatpush2.msra.mxu0 0.0
    %1750 = vmatprep.subr.mxu0 0.0
    %1751 = vmatpush2.msra.mxu0 0.0
    %1752 = vmatprep.subr.mxu0 0.0
    %1753 = vmatpush2.msra.mxu0 0.0
    %1754 = vmatprep.subr.mxu0 0.0
    %1755 = vmatpush2.msra.mxu0 0.0
    %1756 = vmatprep.mubr.f32.mxu0 0.0
    %1757 = vmatmul.mubr.f32.gmra.mxu0 %v1690
    %v1758 = vpop.f32.mrf.mxu0
    %v1759 = vadd.f32 0.0, %v1758
    %v1760 = vpop.f32.mrf.mxu0
    %1761 = vdwg.mxu0
    %1762 = vrot.lane.b32.xlu0 %v493, 40
    %v1763 = vpop.permute.xlu0 %1762
    %v1766 = vsel %vm83, %v1685, 0
    %1768 = vmatprep.subr.mxu0 0.0
    %1769 = vmatpush1.msra.mxu0 0.0
    %1770 = vmatprep.subr.mxu0 0.0
    %1771 = vmatpush1.msra.mxu0 0.0
    %1772 = vmatprep.subr.mxu0 0.0
    %1773 = vmatpush1.msra.mxu0 0.0
    %1774 = vmatprep.subr.mxu0 0.0
    %1775 = vmatpush1.msra.mxu0 0.0
    %1776 = vmatprep.subr.mxu0 0.0
    %1777 = vmatpush1.msra.mxu0 0.0
    %1778 = vmatprep.subr.mxu0 0.0
    %1779 = vmatpush1.msra.mxu0 0.0
    %1780 = vmatprep.subr.mxu0 0.0
    %1781 = vmatpush1.msra.mxu0 0.0
    %1782 = vmatprep.subr.mxu0 0.0
    %1783 = vmatpush1.msra.mxu0 0.0
    %1784 = vmatprep.subr.mxu0 0.0
    %1785 = vmatpush1.msra.mxu0 0.0
    %1786 = vmatprep.subr.mxu0 0.0
    %1787 = vmatpush1.msra.mxu0 0.0
    %1788 = vmatprep.subr.mxu0 0.0
    %1789 = vmatpush1.msra.mxu0 0.0
    %1790 = vmatprep.subr.mxu0 0.0
    %1791 = vmatpush1.msra.mxu0 0.0
    %1792 = vmatprep.subr.mxu0 0.0
    %1793 = vmatpush1.msra.mxu0 0.0
    %1794 = vmatprep.subr.mxu0 0.0
    %1795 = vmatpush1.msra.mxu0 0.0
    %1796 = vmatprep.subr.mxu0 0.0
    %1797 = vmatpush1.msra.mxu0 0.0
    %1798 = vmatprep.subr.mxu0 0.0
    %1799 = vmatpush1.msra.mxu0 %v1763
    %1800 = vmatprep.subr.mxu0 0.0
    %1801 = vmatpush2.msra.mxu0 0.0
    %1802 = vmatprep.subr.mxu0 0.0
    %1803 = vmatpush2.msra.mxu0 0.0
    %1804 = vmatprep.subr.mxu0 0.0
    %1805 = vmatpush2.msra.mxu0 0.0
    %1806 = vmatprep.subr.mxu0 0.0
    %1807 = vmatpush2.msra.mxu0 0.0
    %1808 = vmatprep.subr.mxu0 0.0
    %1809 = vmatpush2.msra.mxu0 0.0
    %1810 = vmatprep.subr.mxu0 0.0
    %1811 = vmatpush2.msra.mxu0 0.0
    %1812 = vmatprep.subr.mxu0 0.0
    %1813 = vmatpush2.msra.mxu0 0.0
    %1814 = vmatprep.subr.mxu0 0.0
    %1815 = vmatpush2.msra.mxu0 0.0
    %1816 = vmatprep.subr.mxu0 0.0
    %1817 = vmatpush2.msra.mxu0 0.0
    %1818 = vmatprep.subr.mxu0 0.0
    %1819 = vmatpush2.msra.mxu0 0.0
    %1820 = vmatprep.subr.mxu0 0.0
    %1821 = vmatpush2.msra.mxu0 0.0
    %1822 = vmatprep.subr.mxu0 0.0
    %1823 = vmatpush2.msra.mxu0 0.0
    %1824 = vmatprep.subr.mxu0 0.0
    %1825 = vmatpush2.msra.mxu0 0.0
    %1826 = vmatprep.subr.mxu0 0.0
    %1827 = vmatpush2.msra.mxu0 0.0
    %1828 = vmatprep.subr.mxu0 0.0
    %1829 = vmatpush2.msra.mxu0 0.0
    %1830 = vmatprep.subr.mxu0 0.0
    %1831 = vmatpush2.msra.mxu0 0.0
    %1832 = vmatprep.mubr.f32.mxu0 0.0
    %1833 = vmatmul.mubr.f32.gmra.mxu0 %v1766
    %v1834 = vpop.f32.mrf.mxu0
    %v1835 = vadd.f32 0.0, %v1834
    %v1836 = vpop.f32.mrf.mxu0
    %1837 = vdwg.mxu0
    %1840 = vrot.lane.b32.xlu0 %v1759, 24
    %v1841 = vpop.permute.xlu0 %1840
    %1842 = vrot.lane.b32.xlu0 %v1835, 24
    %v1843 = vpop.permute.xlu0 %1842
    %vm1846 = vcmask 261312
    %1847 = vst.msk [vmem:[#allocation2] sm:$0xff] %vm1846, %v1841
    %1848 = vst.msk [vmem:[#allocation2 + $0x8] sm:$0xff] %vm1846, %v1843
    %v1849 = vld [vmem:[#allocation2] sm:$0xff]
    %v1850 = vld [vmem:[#allocation2 + $0x8] sm:$0xff]
    %v1851 = vld [vmem:[#allocation7] sm:$0xff]
    %v1852 = vld [vmem:[#allocation7 + $0x8] sm:$0xff]
    %v1853 = vld [vmem:[#allocation7 + $0x10] sm:$0xff]
    %v1854 = vld [vmem:[#allocation7 + $0x18] sm:$0xff]
    %v1855 = vld [vmem:[%s7] sm:$0x1]
    %v1857 = vlaneseq
    %v1858 = vshrl.u32 %v1857, 7
    %v1859 = vsub.s32 0, %v1858
    %v1860 = vrot.slane %v1855, %v1859
    %v1863 = vsel %vm241, %v1849, 0
    %v1866 = vsel %vm241, %v1850, 0
    %1868 = vmatprep.subr.mxu0 0.0
    %1869 = vmatpush1.msra.mxu0 0.0
    %1870 = vmatprep.subr.mxu0 0.0
    %1871 = vmatpush1.msra.mxu0 0.0
    %1872 = vmatprep.subr.mxu0 0.0
    %1873 = vmatpush1.msra.mxu0 0.0
    %1874 = vmatprep.subr.mxu0 0.0
    %1875 = vmatpush1.msra.mxu0 0.0
    %1876 = vmatprep.subr.mxu0 0.0
    %1877 = vmatpush1.msra.mxu0 0.0
    %1878 = vmatprep.subr.mxu0 0.0
    %1879 = vmatpush1.msra.mxu0 0.0
    %1880 = vmatprep.subr.mxu0 0.0
    %1881 = vmatpush1.msra.mxu0 0.0
    %1882 = vmatprep.subr.mxu0 0.0
    %1883 = vmatpush1.msra.mxu0 0.0
    %1884 = vmatprep.subr.mxu0 0.0
    %1885 = vmatpush1.msra.mxu0 0.0
    %1886 = vmatprep.subr.mxu0 0.0
    %1887 = vmatpush1.msra.mxu0 0.0
    %1888 = vmatprep.subr.mxu0 0.0
    %1889 = vmatpush1.msra.mxu0 0.0
    %1890 = vmatprep.subr.mxu0 0.0
    %1891 = vmatpush1.msra.mxu0 0.0
    %1892 = vmatprep.subr.mxu0 0.0
    %1893 = vmatpush1.msra.mxu0 %v1854
    %1894 = vmatprep.subr.mxu0 0.0
    %1895 = vmatpush1.msra.mxu0 %v1853
    %1896 = vmatprep.subr.mxu0 0.0
    %1897 = vmatpush1.msra.mxu0 %v1852
    %1898 = vmatprep.subr.mxu0 0.0
    %1899 = vmatpush1.msra.mxu0 %v1851
    %1900 = vmatprep.subr.mxu0 0.0
    %1901 = vmatpush2.msra.mxu0 0.0
    %1902 = vmatprep.subr.mxu0 0.0
    %1903 = vmatpush2.msra.mxu0 0.0
    %1904 = vmatprep.subr.mxu0 0.0
    %1905 = vmatpush2.msra.mxu0 0.0
    %1906 = vmatprep.subr.mxu0 0.0
    %1907 = vmatpush2.msra.mxu0 0.0
    %1908 = vmatprep.subr.mxu0 0.0
    %1909 = vmatpush2.msra.mxu0 0.0
    %1910 = vmatprep.subr.mxu0 0.0
    %1911 = vmatpush2.msra.mxu0 0.0
    %1912 = vmatprep.subr.mxu0 0.0
    %1913 = vmatpush2.msra.mxu0 0.0
    %1914 = vmatprep.subr.mxu0 0.0
    %1915 = vmatpush2.msra.mxu0 0.0
    %1916 = vmatprep.subr.mxu0 0.0
    %1917 = vmatpush2.msra.mxu0 0.0
    %1918 = vmatprep.subr.mxu0 0.0
    %1919 = vmatpush2.msra.mxu0 0.0
    %1920 = vmatprep.subr.mxu0 0.0
    %1921 = vmatpush2.msra.mxu0 0.0
    %1922 = vmatprep.subr.mxu0 0.0
    %1923 = vmatpush2.msra.mxu0 0.0
    %1924 = vmatprep.subr.mxu0 0.0
    %1925 = vmatpush2.msra.mxu0 0.0
    %1926 = vmatprep.subr.mxu0 0.0
    %1927 = vmatpush2.msra.mxu0 0.0
    %1928 = vmatprep.subr.mxu0 0.0
    %1929 = vmatpush2.msra.mxu0 0.0
    %1930 = vmatprep.subr.mxu0 0.0
    %1931 = vmatpush2.msra.mxu0 0.0
    %1932 = vmatprep.mubr.f32.mxu0 0.0
    %1933 = vmatmul.mubr.f32.gmra.mxu0 %v1863
    %v1934 = vpop.f32.mrf.mxu0
    %v1935 = vadd.f32 %v1860, %v1934
    %v1936 = vpop.f32.mrf.mxu0
    %1937 = vmatprep.mubr.f32.mxu0 0.0
    %1938 = vmatmul.mubr.f32.gmra.mxu0 %v1866
    %v1939 = vpop.f32.mrf.mxu0
    %v1940 = vadd.f32 %v1860, %v1939
    %v1941 = vpop.f32.mrf.mxu0
    %1942 = vdwg.mxu0
    %v1943 = vld [vmem:[%s9] sm:$0xff]
    %v1944 = vld [vmem:[%s9 + $0x8] sm:$0xff]
    %v1945 = vld [vmem:[%s9 + $0x10] sm:$0xff]
    %v1946 = vld [vmem:[%s9 + $0x18] sm:$0xff]
    %v1948 = vsel %vm241, %v1935, 0
    %v1951 = vsel %vm241, %v1940, 0
    %1953 = vmatprep.subr.mxu0 0.0
    %1954 = vmatpush1.msra.mxu0 0.0
    %1955 = vmatprep.subr.mxu0 0.0
    %1956 = vmatpush1.msra.mxu0 0.0
    %1957 = vmatprep.subr.mxu0 0.0
    %1958 = vmatpush1.msra.mxu0 0.0
    %1959 = vmatprep.subr.mxu0 0.0
    %1960 = vmatpush1.msra.mxu0 0.0
    %1961 = vmatprep.subr.mxu0 0.0
    %1962 = vmatpush1.msra.mxu0 0.0
    %1963 = vmatprep.subr.mxu0 0.0
    %1964 = vmatpush1.msra.mxu0 0.0
    %1965 = vmatprep.subr.mxu0 0.0
    %1966 = vmatpush1.msra.mxu0 0.0
    %1967 = vmatprep.subr.mxu0 0.0
    %1968 = vmatpush1.msra.mxu0 0.0
    %1969 = vmatprep.subr.mxu0 0.0
    %1970 = vmatpush1.msra.mxu0 0.0
    %1971 = vmatprep.subr.mxu0 0.0
    %1972 = vmatpush1.msra.mxu0 0.0
    %1973 = vmatprep.subr.mxu0 0.0
    %1974 = vmatpush1.msra.mxu0 0.0
    %1975 = vmatprep.subr.mxu0 0.0
    %1976 = vmatpush1.msra.mxu0 0.0
    %1977 = vmatprep.subr.mxu0 0.0
    %1978 = vmatpush1.msra.mxu0 %v1946
    %1979 = vmatprep.subr.mxu0 0.0
    %1980 = vmatpush1.msra.mxu0 %v1945
    %1981 = vmatprep.subr.mxu0 0.0
    %1982 = vmatpush1.msra.mxu0 %v1944
    %1983 = vmatprep.subr.mxu0 0.0
    %1984 = vmatpush1.msra.mxu0 %v1943
    %1985 = vmatprep.subr.mxu0 0.0
    %1986 = vmatpush2.msra.mxu0 0.0
    %1987 = vmatprep.subr.mxu0 0.0
    %1988 = vmatpush2.msra.mxu0 0.0
    %1989 = vmatprep.subr.mxu0 0.0
    %1990 = vmatpush2.msra.mxu0 0.0
    %1991 = vmatprep.subr.mxu0 0.0
    %1992 = vmatpush2.msra.mxu0 0.0
    %1993 = vmatprep.subr.mxu0 0.0
    %1994 = vmatpush2.msra.mxu0 0.0
    %1995 = vmatprep.subr.mxu0 0.0
    %1996 = vmatpush2.msra.mxu0 0.0
    %1997 = vmatprep.subr.mxu0 0.0
    %1998 = vmatpush2.msra.mxu0 0.0
    %1999 = vmatprep.subr.mxu0 0.0
    %2000 = vmatpush2.msra.mxu0 0.0
    %2001 = vmatprep.subr.mxu0 0.0
    %2002 = vmatpush2.msra.mxu0 0.0
    %2003 = vmatprep.subr.mxu0 0.0
    %2004 = vmatpush2.msra.mxu0 0.0
    %2005 = vmatprep.subr.mxu0 0.0
    %2006 = vmatpush2.msra.mxu0 0.0
    %2007 = vmatprep.subr.mxu0 0.0
    %2008 = vmatpush2.msra.mxu0 0.0
    %2009 = vmatprep.subr.mxu0 0.0
    %2010 = vmatpush2.msra.mxu0 0.0
    %2011 = vmatprep.subr.mxu0 0.0
    %2012 = vmatpush2.msra.mxu0 0.0
    %2013 = vmatprep.subr.mxu0 0.0
    %2014 = vmatpush2.msra.mxu0 0.0
    %2015 = vmatprep.subr.mxu0 0.0
    %2016 = vmatpush2.msra.mxu0 0.0
    %2017 = vmatprep.mubr.f32.mxu0 0.0
    %2018 = vmatmul.mubr.f32.gmra.mxu0 %v1948
    %v2019 = vpop.f32.mrf.mxu0
    %v2020 = vadd.f32 0.0, %v2019
    %v2021 = vpop.f32.mrf.mxu0
    %2022 = vmatprep.mubr.f32.mxu0 0.0
    %2023 = vmatmul.mubr.f32.gmra.mxu0 %v1951
    %v2024 = vpop.f32.mrf.mxu0
    %v2025 = vadd.f32 0.0, %v2024
    %v2026 = vpop.f32.mrf.mxu0
    %2027 = vdwg.mxu0
    %2030 = vrot.lane.b32.xlu0 %v2020, 4
    %v2031 = vpop.permute.xlu0 %2030
    %2032 = vrot.lane.b32.xlu0 %v2025, 4
    %v2033 = vpop.permute.xlu0 %2032
    %vm2036 = vcmask 31744
    %v2037 = vsel %vm2036, %v402, %v2031
    %v2038 = vsel %vm2036, %v407, %v2033
    %v2039 = vld [vmem:[%s10] sm:$0x1]
    %v2041 = vlaneseq
    %v2042 = vshrl.u32 %v2041, 7
    %v2043 = vsub.s32 0, %v2042
    %v2044 = vrot.slane %v2039, %v2043
    %v2046 = vadd.f32 %v2037, %v2044
    %v2047 = vadd.f32 %v2038, %v2044
    %2048 = vst.msk [vmem:[%s11] sm:$0xff] %vm83, %v2046
    %2049 = vst.msk [vmem:[%s11 + $0x8] sm:$0xff] %vm83, %v2047
    // Predicated region
    $region58: #{tpu_custom_call.1} parent=1 // pred_check
      _
    $region59: #{tpu_custom_call.1} parent=1 // pred_check_branch
      %2051 = sbr.rel (0) target = $region61
    $region60: #{tpu_custom_call.1} parent=1 // pred_region
      _
    $region61: #{tpu_custom_call.1} parent=1 // pred_fallthru
      _
    // Predicated region
    $region62: #{tpu_custom_call.1} parent=1 // pred_check
      _
    $region63: #{tpu_custom_call.1} parent=1 // pred_check_branch
      %2053 = sbr.rel (0) target = $region65
    $region64: #{tpu_custom_call.1} parent=1 // pred_region
      _
    $region65: #{tpu_custom_call.1} parent=1 // pred_fallthru
      _
    %2054 = vsyncpa [#allocation4], 1
    %2055 = vsyncpa [#allocation6], 1

</llo_original>
